<compile_context>
chip_gen: v7x
topology: tpu7x:2x2x1
jax: 0.10.0
libtpu: 0.0.40
codegen_flags: <defaults>
</compile_context>

<pallas_src>
from functools import partial

import numpy as np
import jax
import jax.numpy as jnp
from jax.experimental import pallas as pl
from jax.experimental.pallas import tpu as pltpu


def _gfft_kernel(x_ref, b2_ref, phase_ref, out_ref):
    # x: (tm, C)   b2: (C, 2M) = 2*pi*[B|B]   phase: (1, 2M)   out: (tm, 2M)
    proj = jnp.dot(x_ref[...], b2_ref[...], preferred_element_type=jnp.float32)
    # cos(t) = sin(t + pi/2): single range-reduction + polynomial pass over a
    # full lane-dense tile; sin|cos layout matches torch.cat([sin, cos], -1).
    out_ref[...] = jnp.sin(proj + phase_ref[...]).astype(out_ref.dtype)


def _choose_tile_m(N, C, M2, requested):
    """Row-tile size: big (amortize ~0.35us/step), VMEM-safe (lane-padded
    footprint), and >=2 grid steps per TensorCore on v7x (2 TCs)."""
    lane = 128
    cp = -(-C // lane) * lane            # lane-padded input width in VMEM
    mp = -(-M2 // lane) * lane           # lane-padded output width in VMEM
    row_bytes = 2 * 4 * (cp + mp)        # double-buffered f32 in + out per row
    budget = 24 * 1024 * 1024            # fits v7x (64 MiB/TC) with headroom
    tm = min(requested, max(8, budget // row_bytes))
    if N > 32:
        per = -(-N // 4)                 # ceil(N/4): >=2 steps on each of 2 TCs
        per = -(-per // 8) * 8           # round up to sublane multiple
        tm = min(tm, per)
    tm = max(8, (tm // 8) * 8)
    return tm, row_bytes


def gfft_prepare(B):
    """One-time prep (mirrors nn.Module.__init__): fold 2*pi into B, duplicate
    columns for the fused sin|cos output, build the [0, pi/2] phase row."""
    B = jnp.asarray(B, jnp.float32)
    _, M = B.shape
    Bs = (2.0 * np.pi) * B
    B2 = jnp.concatenate([Bs, Bs], axis=1)                       # (C, 2M)
    phase = jnp.concatenate(
        [jnp.zeros((1, M), jnp.float32),
         jnp.full((1, M), 0.5 * np.pi, jnp.float32)], axis=1)    # (1, 2M)
    return B2, phase


@partial(jax.jit, static_argnames=("tile_m", "out_dtype"))
def gfft_apply(x, B2, phase, *, tile_m=8192, out_dtype=jnp.float32):
    """x: [*batches, C], B2/phase from gfft_prepare -> [*batches, 2*M]."""
    *batches, C = x.shape
    Cb, M2 = B2.shape
    assert C == Cb, f"Expected input to have {Cb} channels (got {C} channels)"
    # NOTE: lane-dense stores require M2 % 128 == 0 (true for mapping_size=64);
    # other sizes still work but take the masked-store path.

    x2d = x.reshape(-1, C).astype(jnp.float32)
    N = x2d.shape[0]

    tm, row_bytes = _choose_tile_m(N, C, M2, tile_m)
    grid = (pl.cdiv(N, tm),)             # ragged last block clipped on writeback

    out_bytes = jnp.dtype(out_dtype).itemsize
    cost = pl.CostEstimate(
        flops=2 * N * C * M2 + N * M2,
        transcendentals=N * M2,
        bytes_accessed=N * C * 4 + C * M2 * 4 + M2 * 4 + N * M2 * out_bytes,
    )

    out = pl.pallas_call(
        _gfft_kernel,
        out_shape=jax.ShapeDtypeStruct((N, M2), out_dtype),
        grid_spec=pltpu.PrefetchScalarGridSpec(
            num_scalar_prefetch=0,
            grid=grid,
            in_specs=[
                pl.BlockSpec((tm, C), lambda i: (i, 0)),    # x row tile
                pl.BlockSpec((Cb, M2), lambda i: (0, 0)),   # 2*pi*[B|B], constant
                pl.BlockSpec((1, M2), lambda i: (0, 0)),    # [0, pi/2] phase row
            ],
            out_specs=pl.BlockSpec((tm, M2), lambda i: (i, 0)),  # fused sin|cos
        ),
        compiler_params=pltpu.CompilerParams(
            dimension_semantics=("parallel",),
            vmem_limit_bytes=int(tm * row_bytes + (4 << 20)),
        ),
        cost_estimate=cost,
    )(x2d, B2, phase)

    return out.reshape(*batches, M2)


def gaussian_fourier_feature_transform(x, B, *, tile_m=8192, out_dtype=jnp.float32):
    """One-shot convenience wrapper (prefer gfft_prepare once + gfft_apply)."""
    B2, phase = gfft_prepare(B)
    return gfft_apply(x, B2, phase, tile_m=tile_m, out_dtype=out_dtype)


def reference(x, B):
    proj = 2.0 * np.pi * (x.reshape(-1, x.shape[-1]).astype(jnp.float32)
                          @ B.astype(jnp.float32))
    out = jnp.concatenate([jnp.sin(proj), jnp.cos(proj)], axis=-1)
    return out.reshape(*x.shape[:-1], 2 * B.shape[1])


if __name__ == "__main__":
    num_input_channels = 4
    mapping_size = 64
    scale = 10.0

    key = jax.random.PRNGKey(0)
    kB, kx, kx2 = jax.random.split(key, 3)

    # Deterministic stand-in for torch.randn((C, M), dtype=float64) * scale.
    B = jax.random.normal(kB, (num_input_channels, mapping_size),
                          dtype=jnp.float32) * scale

    # One-time prep (mirrors the module's __init__).
    B2, phase = gfft_prepare(B)

    # Input: [batch, width, height, channels] — channels-last, as the forward
    # implies (`*batches, channels = x.shape`).
    x = jax.random.normal(kx, (2, 16, 16, num_input_channels), dtype=jnp.float32)
    out = jax.block_until_ready(gfft_apply(x, B2, phase))
    assert out.shape == (2, 16, 16, 2 * mapping_size), out.shape
    # f32 angles reach O(100s) with scale=10; folded 2*pi + phase-offset change
    # rounding order vs the reference -> ~1e-4..1e-3 absolute agreement.
    np.testing.assert_allclose(np.asarray(out), np.asarray(reference(x, B)),
                               rtol=1e-4, atol=1e-3)

    # Ragged-N path (N % tile_m != 0): handled by the cdiv grid, no pad/slice.
    x2 = jax.random.normal(kx2, (3, 7, 5, num_input_channels), dtype=jnp.float32)
    out2 = jax.block_until_ready(gfft_apply(x2, B2, phase))
    assert out2.shape == (3, 7, 5, 2 * mapping_size), out2.shape
    np.testing.assert_allclose(np.asarray(out2), np.asarray(reference(x2, B)),
                               rtol=1e-4, atol=1e-3)

    print("KERNEL_OK")
</pallas_src>

<mosaic_0001>
module attributes {stable_mosaic.version = 11 : i64} {
  func.func @_gfft_kernel(%arg0: i32, %arg1: memref<128x4xf32, #tpu.memory_space<vmem>>, %arg2: memref<4x128xf32, #tpu.memory_space<vmem>>, %arg3: memref<1x128xf32, #tpu.memory_space<vmem>>, %arg4: memref<128x128xf32, #tpu.memory_space<vmem>>) attributes {dimension_semantics = [#tpu.dimension_semantics<parallel>], iteration_bounds = array<i64: 4>, scalar_prefetch = 0 : i64, scratch_operands = 0 : i64, tpu.core_type = #tpu.core_type<tc>, window_params = [{transform_indices = @transform_0, window_bounds = array<i64: 128, 4>}, {pipeline_mode = #tpu.pipeline_mode<synchronous>, transform_indices = @transform_1, window_bounds = array<i64: 4, 128>}, {pipeline_mode = #tpu.pipeline_mode<synchronous>, transform_indices = @transform_2, window_bounds = array<i64: 1, 128>}, {transform_indices = @transform_3, window_bounds = array<i64: 128, 128>}]} {
    %c0 = arith.constant 0 : index
    %c0_0 = arith.constant 0 : index
    %0 = vector.load %arg1[%c0, %c0_0] : memref<128x4xf32, #tpu.memory_space<vmem>>, vector<128x4xf32>
    %c0_1 = arith.constant 0 : index
    %c0_2 = arith.constant 0 : index
    %1 = vector.load %arg2[%c0_1, %c0_2] : memref<4x128xf32, #tpu.memory_space<vmem>>, vector<4x128xf32>
    %cst = arith.constant dense<0.000000e+00> : vector<128x128xf32>
    %2 = tpu.matmul %0, %1, %cst {dimension_numbers = #tpu.dot_dimension_numbers<[1], [0], [0], [1], [0, 0, 1, 1], [], []>} : vector<128x4xf32>, vector<4x128xf32>, vector<128x128xf32> -> vector<128x128xf32>
    %c0_3 = arith.constant 0 : index
    %c0_4 = arith.constant 0 : index
    %3 = vector.load %arg3[%c0_3, %c0_4] : memref<1x128xf32, #tpu.memory_space<vmem>>, vector<1x128xf32>
    %4 = vector.broadcast %3 : vector<1x128xf32> to vector<128x128xf32>
    %5 = arith.addf %2, %4 : vector<128x128xf32>
    %6 = math.sin %5 : vector<128x128xf32>
    %c0_5 = arith.constant 0 : index
    %c0_6 = arith.constant 0 : index
    %7 = vector.load %arg4[%c0_5, %c0_6] : memref<128x128xf32, #tpu.memory_space<vmem>>, vector<128x128xf32>
    tpu.vector_store %arg4[%c0_5, %c0_6], %6 {strides = array<i32>} : memref<128x128xf32, #tpu.memory_space<vmem>>, vector<128x128xf32>,
    return
  }
  func.func @transform_0(%arg0: i32) -> (i32, i32) {
    %c0_i32 = arith.constant 0 : i32
    %c0_i32_0 = arith.constant 0 : i32
    return %arg0, %c0_i32 : i32, i32
  }
  func.func @transform_1(%arg0: i32) -> (i32, i32) {
    %c0_i32 = arith.constant 0 : i32
    %c0_i32_0 = arith.constant 0 : i32
    %c0_i32_1 = arith.constant 0 : i32
    return %c0_i32, %c0_i32_0 : i32, i32
  }
  func.func @transform_2(%arg0: i32) -> (i32, i32) {
    %c0_i32 = arith.constant 0 : i32
    %c0_i32_0 = arith.constant 0 : i32
    %c0_i32_1 = arith.constant 0 : i32
    return %c0_i32, %c0_i32_0 : i32, i32
  }
  func.func @transform_3(%arg0: i32) -> (i32, i32) {
    %c0_i32 = arith.constant 0 : i32
    %c0_i32_0 = arith.constant 0 : i32
    return %arg0, %c0_i32 : i32, i32
  }
}

</mosaic_0001>

<llo_original>
// kernel: gfft_apply.1
$region0: #{gfft_apply.1}
  #allocation0 [shape = 'u32[]', space=smem, size = 0x4, offset = 0x4, fixed_abs, tag = 'smem constant byte address 0x4 - core index']
  #allocation1 [shape = 'u32[144,128]{1,0:T(1,128)}', space=vmem, size = 0x12000, scoped, tag = 'internal scratch']
  %s0 = inlined_call_operand.vmem [shape: f32[512,4], index: 0, kind: input, shape index: {}]
  %s1 = inlined_call_operand.vmem [shape: f32[4,128], index: 1, kind: input, shape index: {}]
  %s2 = inlined_call_operand.vmem [shape: f32[1,128], index: 2, kind: input, shape index: {}]
  %s3 = inlined_call_operand.hbm [shape: f32[512,128], index: 3, kind: output, shape index: {}]
  %s4 = sld [smem:[#allocation0]]
  $region45: #{gfft_apply.1} parent=0
    _
  %s6 = ssub.s32 1, %s4
  %s7 = scalar_select 0, %s6, %s4
  $region1: #{gfft_apply.1} parent=0
    #allocation2 [shape = 'u8[131072]{0}', space=vmem, size = 0x20000, scoped, tag = 'output window, operand 0']
    #allocation3 [shape = 's32[2]{0}', space=sflag, size = 0x8, scoped, tag = 'scoped memory for gfft_apply.1']
    %8 = vsyncpa [#allocation3], 0
    %s9 = scalar_lea.sflag [#allocation3], 1
    %10 = vsyncpa %s9, 0
    loop: start=0, step=1, limit=6
    $region2: #{gfft_apply.1} parent=1 // loop_pre_header
      _
    $region3: #{gfft_apply.1} parent=1 // loop_header
      %s12 = sphi 0, %s16
      %p13 = scmp.ge.s32.totalorder %s12, 6
      %s22 = sphi 0, %s24
      %s25 = sphi 0, %s22
      %s26 = sphi 0, %s25
      %s42 = sphi 0, %s26
      %s46 = sphi 0, %s46
      %s48 = sphi 0, %s46
      %s49 = sphi 0, %s48
      %s63 = sphi 0, %s49
      %s67 = sphi 0, %s67
      %s69 = sphi 0, %s67
      %s70 = sphi 0, %s69
      %s84 = sphi 0, %s70
      %s90 = sphi 0, %s92
      %s93 = sphi 0, %s90
      %s94 = sphi 0, %s93
      %s110 = sphi 0, %s94
    $region4: #{gfft_apply.1} parent=1 // loop_header_branch
      %15 = sbr.rel (%p13) target = $region8
    $region5: #{gfft_apply.1} parent=1 // loop_body
      %s17 = ssub.s32 %s12, 1
      %s18 = ssub.s32 %s12, 2
      %s19 = sadd.s32 %s12, 1
      %s20 = ssub.s32 %s12, %s19
      %p21 = scmp.eq.s32.totalorder %s20, 0
      %s23 = sadd.s32 %s22, 1
      %s24 = scalar_select %p21, %s22, %s23
      %p27 = pneg %p21
      %p28 = scmp.eq.s32.totalorder %s12, 3
      %p29 = por %p27, %p28
      %p30 = scmp.ne.s32.totalorder %s22, %s25
      %p31 = scmp.eq.s32.totalorder %s12, 0
      %p32 = por %p30, %p31
      %p33 = scmp.ne.s32.totalorder %s22, %s25
      %p34 = scmp.eq.s32.totalorder %s17, 3
      %p35 = por %p33, %p34
      %p36 = scmp.ne.s32.totalorder %s25, %s26
      %p37 = scmp.eq.s32.totalorder %s17, 0
      %p38 = por %p36, %p37
      %p39 = scmp.ne.s32.totalorder %s25, %s26
      %p40 = scmp.eq.s32.totalorder %s18, 3
      %p41 = por %p39, %p40
      %p43 = scmp.ne.s32.totalorder %s26, %s42
      %p44 = scmp.eq.s32.totalorder %s18, 0
      %p45 = por %p43, %p44
      %s47 = sadd.s32 %s46, 1
      %p50 = scmp.eq.s32.totalorder %s12, 3
      %p51 = scmp.ne.s32.totalorder %s46, %s48
      %p52 = scmp.eq.s32.totalorder %s12, 0
      %p53 = por %p51, %p52
      %p54 = scmp.ne.s32.totalorder %s46, %s48
      %p55 = scmp.eq.s32.totalorder %s17, 3
      %p56 = por %p54, %p55
      %p57 = scmp.ne.s32.totalorder %s48, %s49
      %p58 = scmp.eq.s32.totalorder %s17, 0
      %p59 = por %p57, %p58
      %p60 = scmp.ne.s32.totalorder %s48, %s49
      %p61 = scmp.eq.s32.totalorder %s18, 3
      %p62 = por %p60, %p61
      %p64 = scmp.ne.s32.totalorder %s49, %s63
      %p65 = scmp.eq.s32.totalorder %s18, 0
      %p66 = por %p64, %p65
      %s68 = sadd.s32 %s67, 1
      %p71 = scmp.eq.s32.totalorder %s12, 3
      %p72 = scmp.ne.s32.totalorder %s67, %s69
      %p73 = scmp.eq.s32.totalorder %s12, 0
      %p74 = por %p72, %p73
      %p75 = scmp.ne.s32.totalorder %s67, %s69
      %p76 = scmp.eq.s32.totalorder %s17, 3
      %p77 = por %p75, %p76
      %p78 = scmp.ne.s32.totalorder %s69, %s70
      %p79 = scmp.eq.s32.totalorder %s17, 0
      %p80 = por %p78, %p79
      %p81 = scmp.ne.s32.totalorder %s69, %s70
      %p82 = scmp.eq.s32.totalorder %s18, 3
      %p83 = por %p81, %p82
      %p85 = scmp.ne.s32.totalorder %s70, %s84
      %p86 = scmp.eq.s32.totalorder %s18, 0
      %p87 = por %p85, %p86
      %s88 = ssub.s32 %s12, %s19
      %p89 = scmp.eq.s32.totalorder %s88, 0
      %s91 = sadd.s32 %s90, 1
      %s92 = scalar_select %p89, %s90, %s91
      %p95 = pneg %p89
      %p96 = scmp.eq.s32.totalorder %s12, 3
      %p97 = por %p95, %p96
      %p98 = scmp.ne.s32.totalorder %s90, %s93
      %p99 = scmp.eq.s32.totalorder %s12, 0
      %p100 = por %p98, %p99
      %p101 = scmp.ne.s32.totalorder %s90, %s93
      %p102 = scmp.eq.s32.totalorder %s17, 3
      %p103 = por %p101, %p102
      %p104 = scmp.ne.s32.totalorder %s93, %s94
      %p105 = scmp.eq.s32.totalorder %s17, 0
      %p106 = por %p104, %p105
      %p107 = scmp.ne.s32.totalorder %s93, %s94
      %p108 = scmp.eq.s32.totalorder %s18, 3
      %p109 = por %p107, %p108
      %p111 = scmp.ne.s32.totalorder %s94, %s110
      %p112 = scmp.eq.s32.totalorder %s18, 0
      %p113 = por %p111, %p112
      %p114 = scmp.le.s32.totalorder 1, %s12
      %p115 = scmp.lt.s32.totalorder %s12, 5
      %p116 = pnand %p114, %p115
      %p117 = pneg %p116
      // Predicated region
      $region9: #{gfft_apply.1} parent=5 // pred_check
        _
      $region10: #{gfft_apply.1} parent=5 // pred_check_branch
        %119 = sbr.rel (%p116) target = $region12
      $region11: #{gfft_apply.1} parent=5 // pred_region
        %s120 = ssub.s32 %s12, 1
        // Predicated region
        $region13: #{gfft_apply.1} parent=11 // pred_check
          %p121 = pneg %p59
        $region14: #{gfft_apply.1} parent=11 // pred_check_branch
          %123 = sbr.rel (%p121) target = $region16
        $region15: #{gfft_apply.1} parent=11 // pred_region
          _
        $region16: #{gfft_apply.1} parent=11 // pred_fallthru
          _
        // Predicated region
        $region17: #{gfft_apply.1} parent=11 // pred_check
          %p124 = pneg %p80
        $region18: #{gfft_apply.1} parent=11 // pred_check_branch
          %126 = sbr.rel (%p124) target = $region20
        $region19: #{gfft_apply.1} parent=11 // pred_region
          _
        $region20: #{gfft_apply.1} parent=11 // pred_fallthru
          _
      $region12: #{gfft_apply.1} parent=5 // pred_fallthru
        _
      %p127 = scmp.lt.s32.totalorder %s12, 4
      // Predicated region
      $region21: #{gfft_apply.1} parent=5 // pred_check
        %p128 = pneg %p127
      $region22: #{gfft_apply.1} parent=5 // pred_check_branch
        %130 = sbr.rel (%p128) target = $region24
      $region23: #{gfft_apply.1} parent=5 // pred_region
        // Predicated region
        $region25: #{gfft_apply.1} parent=23 // pred_check
          %p131 = pneg %p32
        $region26: #{gfft_apply.1} parent=23 // pred_check_branch
          %133 = sbr.rel (%p131) target = $region28
        $region27: #{gfft_apply.1} parent=23 // pred_region
          %s134 = smul.u32 16, %s12
          %p135 = scmp.lt.s32.totalorder %s134, 63
          %s136 = scalar_select %p135, %s134, 63
          %s137 = smul.addr %s136, 8
          %s138 = scalar_lea.vmem %s0, %s137
          %s139 = smul.u32 16, %s12
        $region28: #{gfft_apply.1} parent=23 // pred_fallthru
          _
      $region24: #{gfft_apply.1} parent=5 // pred_fallthru
        _
      %p140 = scmp.le.s32.totalorder 1, %s12
      %p141 = scmp.lt.s32.totalorder %s12, 5
      %p142 = pnand %p140, %p141
      %p143 = pneg %p142
      // Predicated region
      $region29: #{gfft_apply.1} parent=5 // pred_check
        _
      $region30: #{gfft_apply.1} parent=5 // pred_check_branch
        %145 = sbr.rel (%p142) target = $region32
      $region31: #{gfft_apply.1} parent=5 // pred_region
        %s146 = ssub.s32 %s12, 1
        %s147 = smul.u32 16, %s17
        %p148 = scmp.lt.s32.totalorder %s147, 63
        %s149 = scalar_select %p148, %s147, 63
        %s150 = smul.addr %s149, 8
        %s151 = scalar_lea.vmem %s0, %s150
        %p152 = pneg %p38
        %p153 = pneg %p35
        %p154 = pneg %p59
        %p155 = pneg %p56
        %p156 = pneg %p80
        %p157 = pneg %p77
        %p158 = pneg %p106
        %p159 = pneg %p103
        %s160 = sand.u32 %s93, 1
        %s161 = scalar_lea.sflag [#allocation3], %s160
        %s162 = sand.u32 %s93, 1
        %s163 = smul.addr %s162, 128
        %s164 = scalar_lea.vmem [#allocation2], %s163
        %s165 = smul.u32 16, %s17
        %p166 = scmp.lt.s32.totalorder %s165, 63
        %s167 = scalar_select %p166, %s165, 63
        %s168 = smul.addr %s167, 8
        %s169 = scalar_lea.vmem %s0, %s168
        %s170 = smul.u32 16, %s17
        %s171 = smul.u32 16, %s17
        %v172 = vld [vmem:[%s169] sm:$0xff]
        %v173 = vld [vmem:[%s169 + $0x8] sm:$0xff]
        %v174 = vld [vmem:[%s169 + $0x10] sm:$0xff]
        %v175 = vld [vmem:[%s169 + $0x18] sm:$0xff]
        %v176 = vld [vmem:[%s169 + $0x20] sm:$0xff]
        %v177 = vld [vmem:[%s169 + $0x28] sm:$0xff]
        %v178 = vld [vmem:[%s169 + $0x30] sm:$0xff]
        %v179 = vld [vmem:[%s169 + $0x38] sm:$0xff]
        %v180 = vld [vmem:[%s169 + $0x40] sm:$0xff]
        %v181 = vld [vmem:[%s169 + $0x48] sm:$0xff]
        %v182 = vld [vmem:[%s169 + $0x50] sm:$0xff]
        %v183 = vld [vmem:[%s169 + $0x58] sm:$0xff]
        %v184 = vld [vmem:[%s169 + $0x60] sm:$0xff]
        %v185 = vld [vmem:[%s169 + $0x68] sm:$0xff]
        %v186 = vld [vmem:[%s169 + $0x70] sm:$0xff]
        %v187 = vld [vmem:[%s169 + $0x78] sm:$0xff]
        %v188 = vld [vmem:[%s1] sm:$0xf]
        %v189 = vld [vmem:[%s2] sm:$0x1]
        %v191 = vlaneseq
        %v192 = vshrl.u32 %v191, 7
        %v193 = vsub.s32 0, %v192
        %v194 = vrot.slane %v189, %v193
        %vm196 = vcmask 31744
        %v198 = vsel %vm196, %v172, 0
        %v201 = vsel %vm196, %v173, 0
        %v204 = vsel %vm196, %v174, 0
        %v207 = vsel %vm196, %v175, 0
        %v210 = vsel %vm196, %v176, 0
        %v213 = vsel %vm196, %v177, 0
        %v216 = vsel %vm196, %v178, 0
        %v219 = vsel %vm196, %v179, 0
        %v222 = vsel %vm196, %v180, 0
        %v225 = vsel %vm196, %v181, 0
        %v228 = vsel %vm196, %v182, 0
        %v231 = vsel %vm196, %v183, 0
        %v234 = vsel %vm196, %v184, 0
        %v237 = vsel %vm196, %v185, 0
        %v240 = vsel %vm196, %v186, 0
        %v243 = vsel %vm196, %v187, 0
        %vm245 = vcmask 1043456
        %v247 = vsel %vm245, %v188, 0
        %249 = vmatprep.subr.mxu0 0.0
        %250 = vmatpush1.msra.mxu0 %v247
        %251 = vmatprep.subr.mxu0 0.0
        %252 = vmatpush1.msra.mxu0 0.0
        %253 = vmatprep.subr.mxu0 0.0
        %254 = vmatpush1.msra.mxu0 0.0
        %255 = vmatprep.subr.mxu0 0.0
        %256 = vmatpush1.msra.mxu0 0.0
        %257 = vmatprep.subr.mxu0 0.0
        %258 = vmatpush1.msra.mxu0 0.0
        %259 = vmatprep.subr.mxu0 0.0
        %260 = vmatpush1.msra.mxu0 0.0
        %261 = vmatprep.subr.mxu0 0.0
        %262 = vmatpush1.msra.mxu0 0.0
        %263 = vmatprep.subr.mxu0 0.0
        %264 = vmatpush1.msra.mxu0 0.0
        %265 = vmatprep.subr.mxu0 0.0
        %266 = vmatpush1.msra.mxu0 0.0
        %267 = vmatprep.subr.mxu0 0.0
        %268 = vmatpush1.msra.mxu0 0.0
        %269 = vmatprep.subr.mxu0 0.0
        %270 = vmatpush1.msra.mxu0 0.0
        %271 = vmatprep.subr.mxu0 0.0
        %272 = vmatpush1.msra.mxu0 0.0
        %273 = vmatprep.subr.mxu0 0.0
        %274 = vmatpush1.msra.mxu0 0.0
        %275 = vmatprep.subr.mxu0 0.0
        %276 = vmatpush1.msra.mxu0 0.0
        %277 = vmatprep.subr.mxu0 0.0
        %278 = vmatpush1.msra.mxu0 0.0
        %279 = vmatprep.subr.mxu0 0.0
        %280 = vmatpush1.msra.mxu0 0.0
        %281 = vmatprep.subr.mxu0 0.0
        %282 = vmatpush1.msra.mxu0 0.0
        %283 = vmatprep.subr.mxu0 0.0
        %284 = vmatpush1.msra.mxu0 0.0
        %285 = vmatprep.subr.mxu0 0.0
        %286 = vmatpush1.msra.mxu0 0.0
        %287 = vmatprep.subr.mxu0 0.0
        %288 = vmatpush1.msra.mxu0 0.0
        %289 = vmatprep.subr.mxu0 0.0
        %290 = vmatpush1.msra.mxu0 0.0
        %291 = vmatprep.subr.mxu0 0.0
        %292 = vmatpush1.msra.mxu0 0.0
        %293 = vmatprep.subr.mxu0 0.0
        %294 = vmatpush1.msra.mxu0 0.0
        %295 = vmatprep.subr.mxu0 0.0
        %296 = vmatpush1.msra.mxu0 0.0
        %297 = vmatprep.subr.mxu0 0.0
        %298 = vmatpush1.msra.mxu0 0.0
        %299 = vmatprep.subr.mxu0 0.0
        %300 = vmatpush1.msra.mxu0 0.0
        %301 = vmatprep.subr.mxu0 0.0
        %302 = vmatpush1.msra.mxu0 0.0
        %303 = vmatprep.subr.mxu0 0.0
        %304 = vmatpush1.msra.mxu0 0.0
        %305 = vmatprep.subr.mxu0 0.0
        %306 = vmatpush1.msra.mxu0 0.0
        %307 = vmatprep.subr.mxu0 0.0
        %308 = vmatpush1.msra.mxu0 0.0
        %309 = vmatprep.subr.mxu0 0.0
        %310 = vmatpush1.msra.mxu0 0.0
        %311 = vmatprep.subr.mxu0 0.0
        %312 = vmatpush1.msra.mxu0 0.0
        %313 = vmatprep.mubr.f32.mxu0 0.0
        %314 = vmatmul.mubr.f32.gmra.mrb[0].mxu0 %v198
        %v315 = vpop.f32.mrb[0].mxu0
        %v316 = vadd.f32 %v194, %v315
        %v317 = vpop.f32.mrb[0].mxu0
        %318 = vmatprep.mubr.f32.mxu0 0.0
        %319 = vmatmul.mubr.f32.gmra.mrb[0].mxu0 %v201
        %v320 = vpop.f32.mrb[0].mxu0
        %v321 = vadd.f32 %v194, %v320
        %v322 = vpop.f32.mrb[0].mxu0
        %323 = vmatprep.mubr.f32.mxu0 0.0
        %324 = vmatmul.mubr.f32.gmra.mrb[0].mxu0 %v204
        %v325 = vpop.f32.mrb[0].mxu0
        %v326 = vadd.f32 %v194, %v325
        %v327 = vpop.f32.mrb[0].mxu0
        %328 = vmatprep.mubr.f32.mxu0 0.0
        %329 = vmatmul.mubr.f32.gmra.mrb[0].mxu0 %v207
        %v330 = vpop.f32.mrb[0].mxu0
        %v331 = vadd.f32 %v194, %v330
        %v332 = vpop.f32.mrb[0].mxu0
        %333 = vmatprep.mubr.f32.mxu0 0.0
        %334 = vmatmul.mubr.f32.gmra.mrb[0].mxu0 %v210
        %v335 = vpop.f32.mrb[0].mxu0
        %v336 = vadd.f32 %v194, %v335
        %v337 = vpop.f32.mrb[0].mxu0
        %338 = vmatprep.mubr.f32.mxu0 0.0
        %339 = vmatmul.mubr.f32.gmra.mrb[0].mxu0 %v213
        %v340 = vpop.f32.mrb[0].mxu0
        %v341 = vadd.f32 %v194, %v340
        %v342 = vpop.f32.mrb[0].mxu0
        %343 = vmatprep.mubr.f32.mxu0 0.0
        %344 = vmatmul.mubr.f32.gmra.mrb[0].mxu0 %v216
        %v345 = vpop.f32.mrb[0].mxu0
        %v346 = vadd.f32 %v194, %v345
        %v347 = vpop.f32.mrb[0].mxu0
        %348 = vmatprep.mubr.f32.mxu0 0.0
        %349 = vmatmul.mubr.f32.gmra.mrb[0].mxu0 %v219
        %v350 = vpop.f32.mrb[0].mxu0
        %v351 = vadd.f32 %v194, %v350
        %v352 = vpop.f32.mrb[0].mxu0
        %353 = vmatprep.mubr.f32.mxu0 0.0
        %354 = vmatmul.mubr.f32.gmra.mrb[0].mxu0 %v222
        %v355 = vpop.f32.mrb[0].mxu0
        %v356 = vadd.f32 %v194, %v355
        %v357 = vpop.f32.mrb[0].mxu0
        %358 = vmatprep.mubr.f32.mxu0 0.0
        %359 = vmatmul.mubr.f32.gmra.mrb[0].mxu0 %v225
        %v360 = vpop.f32.mrb[0].mxu0
        %v361 = vadd.f32 %v194, %v360
        %v362 = vpop.f32.mrb[0].mxu0
        %363 = vmatprep.mubr.f32.mxu0 0.0
        %364 = vmatmul.mubr.f32.gmra.mrb[0].mxu0 %v228
        %v365 = vpop.f32.mrb[0].mxu0
        %v366 = vadd.f32 %v194, %v365
        %v367 = vpop.f32.mrb[0].mxu0
        %368 = vmatprep.mubr.f32.mxu0 0.0
        %369 = vmatmul.mubr.f32.gmra.mrb[0].mxu0 %v231
        %v370 = vpop.f32.mrb[0].mxu0
        %v371 = vadd.f32 %v194, %v370
        %v372 = vpop.f32.mrb[0].mxu0
        %373 = vmatprep.mubr.f32.mxu0 0.0
        %374 = vmatmul.mubr.f32.gmra.mrb[0].mxu0 %v234
        %v375 = vpop.f32.mrb[0].mxu0
        %v376 = vadd.f32 %v194, %v375
        %v377 = vpop.f32.mrb[0].mxu0
        %378 = vmatprep.mubr.f32.mxu0 0.0
        %379 = vmatmul.mubr.f32.gmra.mrb[0].mxu0 %v237
        %v380 = vpop.f32.mrb[0].mxu0
        %v381 = vadd.f32 %v194, %v380
        %v382 = vpop.f32.mrb[0].mxu0
        %383 = vmatprep.mubr.f32.mxu0 0.0
        %384 = vmatmul.mubr.f32.gmra.mrb[0].mxu0 %v240
        %v385 = vpop.f32.mrb[0].mxu0
        %v386 = vadd.f32 %v194, %v385
        %v387 = vpop.f32.mrb[0].mxu0
        %388 = vmatprep.mubr.f32.mxu0 0.0
        %389 = vmatmul.mubr.f32.gmra.mrb[0].mxu0 %v243
        %v390 = vpop.f32.mrb[0].mxu0
        %v391 = vadd.f32 %v194, %v390
        %v392 = vpop.f32.mrb[0].mxu0
        %393 = vdwg.mxu0
        %v394 = vand.u32 2147483647, %v316
        %vm395 = vcmp.le.f32.partialorder %v394, 0.7853982
        %vm396 = vcmp.lt.s32.totalorder %v316, 0
        %v397 = vand.u32 %v316, 2139095040
        %v398 = vshrl.u32 %v397, 23
        %v399 = vsub.s32 %v398, 127
        %v400 = vand.u32 2147483647, %v316
        %v401 = vand.u32 %v400, 8388607
        %v402 = vor.u32 %v401, 8388608
        %v403 = vsub.s32 0, %v402
        %v404 = vadd.s32 %v399, 1
        %vm405 = vcmp.gt.s32.totalorder %v404, 0
        %v406 = vsel %vm405, %v404, 0
        %v407 = vshrl.u32 %v406, 5
        %v408 = vand.u32 %v406, 31
        %v409 = vsub.s32 32, %v408
        %v410 = vshrl.u32 683565275, %v409
        %v411 = vshll.u32 683565275, %v408
        %v412 = vshrl.u32 2475754826, %v409
        %v413 = vor.u32 %v411, %v412
        %v414 = vshll.u32 2475754826, %v408
        %v415 = vshrl.u32 2131351028, %v409
        %v416 = vor.u32 %v414, %v415
        %v417 = vshll.u32 2131351028, %v408
        %v418 = vshrl.u32 2102212464, %v409
        %v419 = vor.u32 %v417, %v418
        %v420 = vshll.u32 2102212464, %v408
        %v421 = vshrl.u32 920167782, %v409
        %v422 = vor.u32 %v420, %v421
        %v423 = vshll.u32 920167782, %v408
        %v424 = vshrl.u32 1326507024, %v409
        %v425 = vor.u32 %v423, %v424
        %vm426 = vcmp.lt.s32.totalorder %v407, 1
        %vm427 = vcmp.lt.s32.totalorder %v407, 2
        %vm428 = vcmp.lt.s32.totalorder %v407, 3
        %vm429 = vcmp.lt.s32.totalorder %v407, 4
        %v430 = vsel %vm426, %v410, %v413
        %v431 = vsel %vm429, %v419, 2102212464
        %v432 = vsel %vm428, %v416, %v431
        %v433 = vsel %vm427, %v430, %v432
        %v434 = vsel %vm426, %v413, %v416
        %v435 = vsel %vm429, %v422, 920167782
        %v436 = vsel %vm428, %v419, %v435
        %v437 = vsel %vm427, %v434, %v436
        %v438 = vsel %vm426, %v416, %v419
        %v439 = vsel %vm429, %v425, 1326507024
        %v440 = vsel %vm428, %v422, %v439
        %v441 = vsel %vm427, %v438, %v440
        %v442 = vshll.u32 %v402, 8
        %v443 = vmul.u32.u64.compose %v442, %v441
        %v444 = vextract.low.u32 %v443
        %v445 = vextract.high.u32 %v443
        %v446 = vmul.u32.u64.compose %v442, %v437
        %v447 = vextract.low.u32 %v446
        %v448 = vextract.high.u32 %v446
        %v449 = vmul.u32 %v442, %v433
        %v450 = vadd.s32 %v445, %v447
        %vm451 = vc.u32 %v445, %v447
        %v452 = vadd.s32 %v448, 1
        %v453 = vsel %vm451, %v452, %v448
        %v454 = vadd.s32 %v449, %v453
        %v455 = vadd.s32 %v454, 536870912
        %v456 = vshrl.u32 %v455, 30
        %v457 = vshll.u32 %v456, 30
        %v458 = vsub.s32 %v454, %v457
        %vm459 = vcmp.lt.s32.totalorder %v458, 0
        %v460 = vsub.s32 0, %v458
        %v461 = vsel %vm459, %v460, %v458
        %v462 = vclz %v461
        %v463 = vsub.s32 %v462, 2
        %vm464 = vcmp.gt.s32.totalorder 0, %v463
        %v465 = vsel %vm464, 0, %v463
        %v466 = vsub.s32 32, %v465
        %v467 = vshll.u32 %v458, %v465
        %v468 = vshrl.u32 %v450, %v466
        %v469 = vor.u32 %v467, %v468
        %v470 = vsub.s32 4294967266, %v465
        %v471 = vadd.s32 %v470, 127
        %v472 = vshll.u32 %v471, 23
        %v473 = vor.u32 4788187, %v472
        %v474 = vand.u32 2147483647, %v473
        %v476 = vcvt.s32.f32 %v469
        %v477 = vmul.f32 %v476, %v474
        %v478 = vxor.u32 %v477, 2147483648
        %v479 = vsel %vm396, %v478, %v477
        %v480 = vsub.s32 4, %v456
        %v481 = vsel %vm396, %v480, %v456
        %v482 = vsel %vm395, %v316, %v479
        %v483 = vsel %vm395, 0, %v481
        %v484 = vcosq.f32.pop %v482
        %v485 = vsinq.f32.pop %v482
        %vm486 = vweird.f32 %v316
        %v487 = vadd.s32 %v483, 3
        %v488 = vand.u32 %v487, 3
        %vm489 = vcmp.lt.s32.totalorder %v488, 2
        %vm490 = vcmp.eq.s32.totalorder %v488, 0
        %v491 = vxor.u32 %v485, 2147483648
        %v492 = vsel %vm490, %v484, %v491
        %vm493 = vcmp.eq.s32.totalorder %v488, 2
        %v494 = vxor.u32 %v484, 2147483648
        %v495 = vsel %vm493, %v494, %v485
        %v496 = vsel %vm489, %v492, %v495
        %v497 = vsel %vm486, nan, %v496
        %v498 = vand.u32 2147483647, %v321
        %vm499 = vcmp.le.f32.partialorder %v498, 0.7853982
        %vm500 = vcmp.lt.s32.totalorder %v321, 0
        %v501 = vand.u32 %v321, 2139095040
        %v502 = vshrl.u32 %v501, 23
        %v503 = vsub.s32 %v502, 127
        %v504 = vand.u32 2147483647, %v321
        %v505 = vand.u32 %v504, 8388607
        %v506 = vor.u32 %v505, 8388608
        %v507 = vsub.s32 0, %v506
        %v508 = vadd.s32 %v503, 1
        %vm509 = vcmp.gt.s32.totalorder %v508, 0
        %v510 = vsel %vm509, %v508, 0
        %v511 = vshrl.u32 %v510, 5
        %v512 = vand.u32 %v510, 31
        %v513 = vsub.s32 32, %v512
        %v514 = vshrl.u32 683565275, %v513
        %v515 = vshll.u32 683565275, %v512
        %v516 = vshrl.u32 2475754826, %v513
        %v517 = vor.u32 %v515, %v516
        %v518 = vshll.u32 2475754826, %v512
        %v519 = vshrl.u32 2131351028, %v513
        %v520 = vor.u32 %v518, %v519
        %v521 = vshll.u32 2131351028, %v512
        %v522 = vshrl.u32 2102212464, %v513
        %v523 = vor.u32 %v521, %v522
        %v524 = vshll.u32 2102212464, %v512
        %v525 = vshrl.u32 920167782, %v513
        %v526 = vor.u32 %v524, %v525
        %v527 = vshll.u32 920167782, %v512
        %v528 = vshrl.u32 1326507024, %v513
        %v529 = vor.u32 %v527, %v528
        %vm530 = vcmp.lt.s32.totalorder %v511, 1
        %vm531 = vcmp.lt.s32.totalorder %v511, 2
        %vm532 = vcmp.lt.s32.totalorder %v511, 3
        %vm533 = vcmp.lt.s32.totalorder %v511, 4
        %v534 = vsel %vm530, %v514, %v517
        %v535 = vsel %vm533, %v523, 2102212464
        %v536 = vsel %vm532, %v520, %v535
        %v537 = vsel %vm531, %v534, %v536
        %v538 = vsel %vm530, %v517, %v520
        %v539 = vsel %vm533, %v526, 920167782
        %v540 = vsel %vm532, %v523, %v539
        %v541 = vsel %vm531, %v538, %v540
        %v542 = vsel %vm530, %v520, %v523
        %v543 = vsel %vm533, %v529, 1326507024
        %v544 = vsel %vm532, %v526, %v543
        %v545 = vsel %vm531, %v542, %v544
        %v546 = vshll.u32 %v506, 8
        %v547 = vmul.u32.u64.compose %v546, %v545
        %v548 = vextract.low.u32 %v547
        %v549 = vextract.high.u32 %v547
        %v550 = vmul.u32.u64.compose %v546, %v541
        %v551 = vextract.low.u32 %v550
        %v552 = vextract.high.u32 %v550
        %v553 = vmul.u32 %v546, %v537
        %v554 = vadd.s32 %v549, %v551
        %vm555 = vc.u32 %v549, %v551
        %v556 = vadd.s32 %v552, 1
        %v557 = vsel %vm555, %v556, %v552
        %v558 = vadd.s32 %v553, %v557
        %v559 = vadd.s32 %v558, 536870912
        %v560 = vshrl.u32 %v559, 30
        %v561 = vshll.u32 %v560, 30
        %v562 = vsub.s32 %v558, %v561
        %vm563 = vcmp.lt.s32.totalorder %v562, 0
        %v564 = vsub.s32 0, %v562
        %v565 = vsel %vm563, %v564, %v562
        %v566 = vclz %v565
        %v567 = vsub.s32 %v566, 2
        %vm568 = vcmp.gt.s32.totalorder 0, %v567
        %v569 = vsel %vm568, 0, %v567
        %v570 = vsub.s32 32, %v569
        %v571 = vshll.u32 %v562, %v569
        %v572 = vshrl.u32 %v554, %v570
        %v573 = vor.u32 %v571, %v572
        %v574 = vsub.s32 4294967266, %v569
        %v575 = vadd.s32 %v574, 127
        %v576 = vshll.u32 %v575, 23
        %v577 = vor.u32 4788187, %v576
        %v578 = vand.u32 2147483647, %v577
        %v580 = vcvt.s32.f32 %v573
        %v581 = vmul.f32 %v580, %v578
        %v582 = vxor.u32 %v581, 2147483648
        %v583 = vsel %vm500, %v582, %v581
        %v584 = vsub.s32 4, %v560
        %v585 = vsel %vm500, %v584, %v560
        %v586 = vsel %vm499, %v321, %v583
        %v587 = vsel %vm499, 0, %v585
        %v588 = vcosq.f32.pop %v586
        %v589 = vsinq.f32.pop %v586
        %vm590 = vweird.f32 %v321
        %v591 = vadd.s32 %v587, 3
        %v592 = vand.u32 %v591, 3
        %vm593 = vcmp.lt.s32.totalorder %v592, 2
        %vm594 = vcmp.eq.s32.totalorder %v592, 0
        %v595 = vxor.u32 %v589, 2147483648
        %v596 = vsel %vm594, %v588, %v595
        %vm597 = vcmp.eq.s32.totalorder %v592, 2
        %v598 = vxor.u32 %v588, 2147483648
        %v599 = vsel %vm597, %v598, %v589
        %v600 = vsel %vm593, %v596, %v599
        %v601 = vsel %vm590, nan, %v600
        %v602 = vand.u32 2147483647, %v326
        %vm603 = vcmp.le.f32.partialorder %v602, 0.7853982
        %vm604 = vcmp.lt.s32.totalorder %v326, 0
        %v605 = vand.u32 %v326, 2139095040
        %v606 = vshrl.u32 %v605, 23
        %v607 = vsub.s32 %v606, 127
        %v608 = vand.u32 2147483647, %v326
        %v609 = vand.u32 %v608, 8388607
        %v610 = vor.u32 %v609, 8388608
        %v611 = vsub.s32 0, %v610
        %v612 = vadd.s32 %v607, 1
        %vm613 = vcmp.gt.s32.totalorder %v612, 0
        %v614 = vsel %vm613, %v612, 0
        %v615 = vshrl.u32 %v614, 5
        %v616 = vand.u32 %v614, 31
        %v617 = vsub.s32 32, %v616
        %v618 = vshrl.u32 683565275, %v617
        %v619 = vshll.u32 683565275, %v616
        %v620 = vshrl.u32 2475754826, %v617
        %v621 = vor.u32 %v619, %v620
        %v622 = vshll.u32 2475754826, %v616
        %v623 = vshrl.u32 2131351028, %v617
        %v624 = vor.u32 %v622, %v623
        %v625 = vshll.u32 2131351028, %v616
        %v626 = vshrl.u32 2102212464, %v617
        %v627 = vor.u32 %v625, %v626
        %v628 = vshll.u32 2102212464, %v616
        %v629 = vshrl.u32 920167782, %v617
        %v630 = vor.u32 %v628, %v629
        %v631 = vshll.u32 920167782, %v616
        %v632 = vshrl.u32 1326507024, %v617
        %v633 = vor.u32 %v631, %v632
        %vm634 = vcmp.lt.s32.totalorder %v615, 1
        %vm635 = vcmp.lt.s32.totalorder %v615, 2
        %vm636 = vcmp.lt.s32.totalorder %v615, 3
        %vm637 = vcmp.lt.s32.totalorder %v615, 4
        %v638 = vsel %vm634, %v618, %v621
        %v639 = vsel %vm637, %v627, 2102212464
        %v640 = vsel %vm636, %v624, %v639
        %v641 = vsel %vm635, %v638, %v640
        %v642 = vsel %vm634, %v621, %v624
        %v643 = vsel %vm637, %v630, 920167782
        %v644 = vsel %vm636, %v627, %v643
        %v645 = vsel %vm635, %v642, %v644
        %v646 = vsel %vm634, %v624, %v627
        %v647 = vsel %vm637, %v633, 1326507024
        %v648 = vsel %vm636, %v630, %v647
        %v649 = vsel %vm635, %v646, %v648
        %v650 = vshll.u32 %v610, 8
        %v651 = vmul.u32.u64.compose %v650, %v649
        %v652 = vextract.low.u32 %v651
        %v653 = vextract.high.u32 %v651
        %v654 = vmul.u32.u64.compose %v650, %v645
        %v655 = vextract.low.u32 %v654
        %v656 = vextract.high.u32 %v654
        %v657 = vmul.u32 %v650, %v641
        %v658 = vadd.s32 %v653, %v655
        %vm659 = vc.u32 %v653, %v655
        %v660 = vadd.s32 %v656, 1
        %v661 = vsel %vm659, %v660, %v656
        %v662 = vadd.s32 %v657, %v661
        %v663 = vadd.s32 %v662, 536870912
        %v664 = vshrl.u32 %v663, 30
        %v665 = vshll.u32 %v664, 30
        %v666 = vsub.s32 %v662, %v665
        %vm667 = vcmp.lt.s32.totalorder %v666, 0
        %v668 = vsub.s32 0, %v666
        %v669 = vsel %vm667, %v668, %v666
        %v670 = vclz %v669
        %v671 = vsub.s32 %v670, 2
        %vm672 = vcmp.gt.s32.totalorder 0, %v671
        %v673 = vsel %vm672, 0, %v671
        %v674 = vsub.s32 32, %v673
        %v675 = vshll.u32 %v666, %v673
        %v676 = vshrl.u32 %v658, %v674
        %v677 = vor.u32 %v675, %v676
        %v678 = vsub.s32 4294967266, %v673
        %v679 = vadd.s32 %v678, 127
        %v680 = vshll.u32 %v679, 23
        %v681 = vor.u32 4788187, %v680
        %v682 = vand.u32 2147483647, %v681
        %v684 = vcvt.s32.f32 %v677
        %v685 = vmul.f32 %v684, %v682
        %v686 = vxor.u32 %v685, 2147483648
        %v687 = vsel %vm604, %v686, %v685
        %v688 = vsub.s32 4, %v664
        %v689 = vsel %vm604, %v688, %v664
        %v690 = vsel %vm603, %v326, %v687
        %v691 = vsel %vm603, 0, %v689
        %v692 = vcosq.f32.pop %v690
        %v693 = vsinq.f32.pop %v690
        %vm694 = vweird.f32 %v326
        %v695 = vadd.s32 %v691, 3
        %v696 = vand.u32 %v695, 3
        %vm697 = vcmp.lt.s32.totalorder %v696, 2
        %vm698 = vcmp.eq.s32.totalorder %v696, 0
        %v699 = vxor.u32 %v693, 2147483648
        %v700 = vsel %vm698, %v692, %v699
        %vm701 = vcmp.eq.s32.totalorder %v696, 2
        %v702 = vxor.u32 %v692, 2147483648
        %v703 = vsel %vm701, %v702, %v693
        %v704 = vsel %vm697, %v700, %v703
        %v705 = vsel %vm694, nan, %v704
        %v706 = vand.u32 2147483647, %v331
        %vm707 = vcmp.le.f32.partialorder %v706, 0.7853982
        %vm708 = vcmp.lt.s32.totalorder %v331, 0
        %v709 = vand.u32 %v331, 2139095040
        %v710 = vshrl.u32 %v709, 23
        %v711 = vsub.s32 %v710, 127
        %v712 = vand.u32 2147483647, %v331
        %v713 = vand.u32 %v712, 8388607
        %v714 = vor.u32 %v713, 8388608
        %v715 = vsub.s32 0, %v714
        %v716 = vadd.s32 %v711, 1
        %vm717 = vcmp.gt.s32.totalorder %v716, 0
        %v718 = vsel %vm717, %v716, 0
        %v719 = vshrl.u32 %v718, 5
        %v720 = vand.u32 %v718, 31
        %v721 = vsub.s32 32, %v720
        %v722 = vshrl.u32 683565275, %v721
        %v723 = vshll.u32 683565275, %v720
        %v724 = vshrl.u32 2475754826, %v721
        %v725 = vor.u32 %v723, %v724
        %v726 = vshll.u32 2475754826, %v720
        %v727 = vshrl.u32 2131351028, %v721
        %v728 = vor.u32 %v726, %v727
        %v729 = vshll.u32 2131351028, %v720
        %v730 = vshrl.u32 2102212464, %v721
        %v731 = vor.u32 %v729, %v730
        %v732 = vshll.u32 2102212464, %v720
        %v733 = vshrl.u32 920167782, %v721
        %v734 = vor.u32 %v732, %v733
        %v735 = vshll.u32 920167782, %v720
        %v736 = vshrl.u32 1326507024, %v721
        %v737 = vor.u32 %v735, %v736
        %vm738 = vcmp.lt.s32.totalorder %v719, 1
        %vm739 = vcmp.lt.s32.totalorder %v719, 2
        %vm740 = vcmp.lt.s32.totalorder %v719, 3
        %vm741 = vcmp.lt.s32.totalorder %v719, 4
        %v742 = vsel %vm738, %v722, %v725
        %v743 = vsel %vm741, %v731, 2102212464
        %v744 = vsel %vm740, %v728, %v743
        %v745 = vsel %vm739, %v742, %v744
        %v746 = vsel %vm738, %v725, %v728
        %v747 = vsel %vm741, %v734, 920167782
        %v748 = vsel %vm740, %v731, %v747
        %v749 = vsel %vm739, %v746, %v748
        %v750 = vsel %vm738, %v728, %v731
        %v751 = vsel %vm741, %v737, 1326507024
        %v752 = vsel %vm740, %v734, %v751
        %v753 = vsel %vm739, %v750, %v752
        %v754 = vshll.u32 %v714, 8
        %v755 = vmul.u32.u64.compose %v754, %v753
        %v756 = vextract.low.u32 %v755
        %v757 = vextract.high.u32 %v755
        %v758 = vmul.u32.u64.compose %v754, %v749
        %v759 = vextract.low.u32 %v758
        %v760 = vextract.high.u32 %v758
        %v761 = vmul.u32 %v754, %v745
        %v762 = vadd.s32 %v757, %v759
        %vm763 = vc.u32 %v757, %v759
        %v764 = vadd.s32 %v760, 1
        %v765 = vsel %vm763, %v764, %v760
        %v766 = vadd.s32 %v761, %v765
        %v767 = vadd.s32 %v766, 536870912
        %v768 = vshrl.u32 %v767, 30
        %v769 = vshll.u32 %v768, 30
        %v770 = vsub.s32 %v766, %v769
        %vm771 = vcmp.lt.s32.totalorder %v770, 0
        %v772 = vsub.s32 0, %v770
        %v773 = vsel %vm771, %v772, %v770
        %v774 = vclz %v773
        %v775 = vsub.s32 %v774, 2
        %vm776 = vcmp.gt.s32.totalorder 0, %v775
        %v777 = vsel %vm776, 0, %v775
        %v778 = vsub.s32 32, %v777
        %v779 = vshll.u32 %v770, %v777
        %v780 = vshrl.u32 %v762, %v778
        %v781 = vor.u32 %v779, %v780
        %v782 = vsub.s32 4294967266, %v777
        %v783 = vadd.s32 %v782, 127
        %v784 = vshll.u32 %v783, 23
        %v785 = vor.u32 4788187, %v784
        %v786 = vand.u32 2147483647, %v785
        %v788 = vcvt.s32.f32 %v781
        %v789 = vmul.f32 %v788, %v786
        %v790 = vxor.u32 %v789, 2147483648
        %v791 = vsel %vm708, %v790, %v789
        %v792 = vsub.s32 4, %v768
        %v793 = vsel %vm708, %v792, %v768
        %v794 = vsel %vm707, %v331, %v791
        %v795 = vsel %vm707, 0, %v793
        %v796 = vcosq.f32.pop %v794
        %v797 = vsinq.f32.pop %v794
        %vm798 = vweird.f32 %v331
        %v799 = vadd.s32 %v795, 3
        %v800 = vand.u32 %v799, 3
        %vm801 = vcmp.lt.s32.totalorder %v800, 2
        %vm802 = vcmp.eq.s32.totalorder %v800, 0
        %v803 = vxor.u32 %v797, 2147483648
        %v804 = vsel %vm802, %v796, %v803
        %vm805 = vcmp.eq.s32.totalorder %v800, 2
        %v806 = vxor.u32 %v796, 2147483648
        %v807 = vsel %vm805, %v806, %v797
        %v808 = vsel %vm801, %v804, %v807
        %v809 = vsel %vm798, nan, %v808
        %v810 = vand.u32 2147483647, %v336
        %vm811 = vcmp.le.f32.partialorder %v810, 0.7853982
        %vm812 = vcmp.lt.s32.totalorder %v336, 0
        %v813 = vand.u32 %v336, 2139095040
        %v814 = vshrl.u32 %v813, 23
        %v815 = vsub.s32 %v814, 127
        %v816 = vand.u32 2147483647, %v336
        %v817 = vand.u32 %v816, 8388607
        %v818 = vor.u32 %v817, 8388608
        %v819 = vsub.s32 0, %v818
        %v820 = vadd.s32 %v815, 1
        %vm821 = vcmp.gt.s32.totalorder %v820, 0
        %v822 = vsel %vm821, %v820, 0
        %v823 = vshrl.u32 %v822, 5
        %v824 = vand.u32 %v822, 31
        %v825 = vsub.s32 32, %v824
        %v826 = vshrl.u32 683565275, %v825
        %v827 = vshll.u32 683565275, %v824
        %v828 = vshrl.u32 2475754826, %v825
        %v829 = vor.u32 %v827, %v828
        %v830 = vshll.u32 2475754826, %v824
        %v831 = vshrl.u32 2131351028, %v825
        %v832 = vor.u32 %v830, %v831
        %v833 = vshll.u32 2131351028, %v824
        %v834 = vshrl.u32 2102212464, %v825
        %v835 = vor.u32 %v833, %v834
        %v836 = vshll.u32 2102212464, %v824
        %v837 = vshrl.u32 920167782, %v825
        %v838 = vor.u32 %v836, %v837
        %v839 = vshll.u32 920167782, %v824
        %v840 = vshrl.u32 1326507024, %v825
        %v841 = vor.u32 %v839, %v840
        %vm842 = vcmp.lt.s32.totalorder %v823, 1
        %vm843 = vcmp.lt.s32.totalorder %v823, 2
        %vm844 = vcmp.lt.s32.totalorder %v823, 3
        %vm845 = vcmp.lt.s32.totalorder %v823, 4
        %v846 = vsel %vm842, %v826, %v829
        %v847 = vsel %vm845, %v835, 2102212464
        %v848 = vsel %vm844, %v832, %v847
        %v849 = vsel %vm843, %v846, %v848
        %v850 = vsel %vm842, %v829, %v832
        %v851 = vsel %vm845, %v838, 920167782
        %v852 = vsel %vm844, %v835, %v851
        %v853 = vsel %vm843, %v850, %v852
        %v854 = vsel %vm842, %v832, %v835
        %v855 = vsel %vm845, %v841, 1326507024
        %v856 = vsel %vm844, %v838, %v855
        %v857 = vsel %vm843, %v854, %v856
        %v858 = vshll.u32 %v818, 8
        %v859 = vmul.u32.u64.compose %v858, %v857
        %v860 = vextract.low.u32 %v859
        %v861 = vextract.high.u32 %v859
        %v862 = vmul.u32.u64.compose %v858, %v853
        %v863 = vextract.low.u32 %v862
        %v864 = vextract.high.u32 %v862
        %v865 = vmul.u32 %v858, %v849
        %v866 = vadd.s32 %v861, %v863
        %vm867 = vc.u32 %v861, %v863
        %v868 = vadd.s32 %v864, 1
        %v869 = vsel %vm867, %v868, %v864
        %v870 = vadd.s32 %v865, %v869
        %v871 = vadd.s32 %v870, 536870912
        %v872 = vshrl.u32 %v871, 30
        %v873 = vshll.u32 %v872, 30
        %v874 = vsub.s32 %v870, %v873
        %vm875 = vcmp.lt.s32.totalorder %v874, 0
        %v876 = vsub.s32 0, %v874
        %v877 = vsel %vm875, %v876, %v874
        %v878 = vclz %v877
        %v879 = vsub.s32 %v878, 2
        %vm880 = vcmp.gt.s32.totalorder 0, %v879
        %v881 = vsel %vm880, 0, %v879
        %v882 = vsub.s32 32, %v881
        %v883 = vshll.u32 %v874, %v881
        %v884 = vshrl.u32 %v866, %v882
        %v885 = vor.u32 %v883, %v884
        %v886 = vsub.s32 4294967266, %v881
        %v887 = vadd.s32 %v886, 127
        %v888 = vshll.u32 %v887, 23
        %v889 = vor.u32 4788187, %v888
        %v890 = vand.u32 2147483647, %v889
        %v892 = vcvt.s32.f32 %v885
        %v893 = vmul.f32 %v892, %v890
        %v894 = vxor.u32 %v893, 2147483648
        %v895 = vsel %vm812, %v894, %v893
        %v896 = vsub.s32 4, %v872
        %v897 = vsel %vm812, %v896, %v872
        %v898 = vsel %vm811, %v336, %v895
        %v899 = vsel %vm811, 0, %v897
        %v900 = vcosq.f32.pop %v898
        %v901 = vsinq.f32.pop %v898
        %vm902 = vweird.f32 %v336
        %v903 = vadd.s32 %v899, 3
        %v904 = vand.u32 %v903, 3
        %vm905 = vcmp.lt.s32.totalorder %v904, 2
        %vm906 = vcmp.eq.s32.totalorder %v904, 0
        %v907 = vxor.u32 %v901, 2147483648
        %v908 = vsel %vm906, %v900, %v907
        %vm909 = vcmp.eq.s32.totalorder %v904, 2
        %v910 = vxor.u32 %v900, 2147483648
        %v911 = vsel %vm909, %v910, %v901
        %v912 = vsel %vm905, %v908, %v911
        %v913 = vsel %vm902, nan, %v912
        %v914 = vand.u32 2147483647, %v341
        %vm915 = vcmp.le.f32.partialorder %v914, 0.7853982
        %vm916 = vcmp.lt.s32.totalorder %v341, 0
        %v917 = vand.u32 %v341, 2139095040
        %v918 = vshrl.u32 %v917, 23
        %v919 = vsub.s32 %v918, 127
        %v920 = vand.u32 2147483647, %v341
        %v921 = vand.u32 %v920, 8388607
        %v922 = vor.u32 %v921, 8388608
        %v923 = vsub.s32 0, %v922
        %v924 = vadd.s32 %v919, 1
        %vm925 = vcmp.gt.s32.totalorder %v924, 0
        %v926 = vsel %vm925, %v924, 0
        %v927 = vshrl.u32 %v926, 5
        %v928 = vand.u32 %v926, 31
        %v929 = vsub.s32 32, %v928
        %v930 = vshrl.u32 683565275, %v929
        %v931 = vshll.u32 683565275, %v928
        %v932 = vshrl.u32 2475754826, %v929
        %v933 = vor.u32 %v931, %v932
        %v934 = vshll.u32 2475754826, %v928
        %v935 = vshrl.u32 2131351028, %v929
        %v936 = vor.u32 %v934, %v935
        %v937 = vshll.u32 2131351028, %v928
        %v938 = vshrl.u32 2102212464, %v929
        %v939 = vor.u32 %v937, %v938
        %v940 = vshll.u32 2102212464, %v928
        %v941 = vshrl.u32 920167782, %v929
        %v942 = vor.u32 %v940, %v941
        %v943 = vshll.u32 920167782, %v928
        %v944 = vshrl.u32 1326507024, %v929
        %v945 = vor.u32 %v943, %v944
        %vm946 = vcmp.lt.s32.totalorder %v927, 1
        %vm947 = vcmp.lt.s32.totalorder %v927, 2
        %vm948 = vcmp.lt.s32.totalorder %v927, 3
        %vm949 = vcmp.lt.s32.totalorder %v927, 4
        %v950 = vsel %vm946, %v930, %v933
        %v951 = vsel %vm949, %v939, 2102212464
        %v952 = vsel %vm948, %v936, %v951
        %v953 = vsel %vm947, %v950, %v952
        %v954 = vsel %vm946, %v933, %v936
        %v955 = vsel %vm949, %v942, 920167782
        %v956 = vsel %vm948, %v939, %v955
        %v957 = vsel %vm947, %v954, %v956
        %v958 = vsel %vm946, %v936, %v939
        %v959 = vsel %vm949, %v945, 1326507024
        %v960 = vsel %vm948, %v942, %v959
        %v961 = vsel %vm947, %v958, %v960
        %v962 = vshll.u32 %v922, 8
        %v963 = vmul.u32.u64.compose %v962, %v961
        %v964 = vextract.low.u32 %v963
        %v965 = vextract.high.u32 %v963
        %v966 = vmul.u32.u64.compose %v962, %v957
        %v967 = vextract.low.u32 %v966
        %v968 = vextract.high.u32 %v966
        %v969 = vmul.u32 %v962, %v953
        %v970 = vadd.s32 %v965, %v967
        %vm971 = vc.u32 %v965, %v967
        %v972 = vadd.s32 %v968, 1
        %v973 = vsel %vm971, %v972, %v968
        %v974 = vadd.s32 %v969, %v973
        %v975 = vadd.s32 %v974, 536870912
        %v976 = vshrl.u32 %v975, 30
        %v977 = vshll.u32 %v976, 30
        %v978 = vsub.s32 %v974, %v977
        %vm979 = vcmp.lt.s32.totalorder %v978, 0
        %v980 = vsub.s32 0, %v978
        %v981 = vsel %vm979, %v980, %v978
        %v982 = vclz %v981
        %v983 = vsub.s32 %v982, 2
        %vm984 = vcmp.gt.s32.totalorder 0, %v983
        %v985 = vsel %vm984, 0, %v983
        %v986 = vsub.s32 32, %v985
        %v987 = vshll.u32 %v978, %v985
        %v988 = vshrl.u32 %v970, %v986
        %v989 = vor.u32 %v987, %v988
        %v990 = vsub.s32 4294967266, %v985
        %v991 = vadd.s32 %v990, 127
        %v992 = vshll.u32 %v991, 23
        %v993 = vor.u32 4788187, %v992
        %v994 = vand.u32 2147483647, %v993
        %v996 = vcvt.s32.f32 %v989
        %v997 = vmul.f32 %v996, %v994
        %v998 = vxor.u32 %v997, 2147483648
        %v999 = vsel %vm916, %v998, %v997
        %v1000 = vsub.s32 4, %v976
        %v1001 = vsel %vm916, %v1000, %v976
        %v1002 = vsel %vm915, %v341, %v999
        %v1003 = vsel %vm915, 0, %v1001
        %v1004 = vcosq.f32.pop %v1002
        %v1005 = vsinq.f32.pop %v1002
        %vm1006 = vweird.f32 %v341
        %v1007 = vadd.s32 %v1003, 3
        %v1008 = vand.u32 %v1007, 3
        %vm1009 = vcmp.lt.s32.totalorder %v1008, 2
        %vm1010 = vcmp.eq.s32.totalorder %v1008, 0
        %v1011 = vxor.u32 %v1005, 2147483648
        %v1012 = vsel %vm1010, %v1004, %v1011
        %vm1013 = vcmp.eq.s32.totalorder %v1008, 2
        %v1014 = vxor.u32 %v1004, 2147483648
        %v1015 = vsel %vm1013, %v1014, %v1005
        %v1016 = vsel %vm1009, %v1012, %v1015
        %v1017 = vsel %vm1006, nan, %v1016
        %v1018 = vand.u32 2147483647, %v346
        %vm1019 = vcmp.le.f32.partialorder %v1018, 0.7853982
        %vm1020 = vcmp.lt.s32.totalorder %v346, 0
        %v1021 = vand.u32 %v346, 2139095040
        %v1022 = vshrl.u32 %v1021, 23
        %v1023 = vsub.s32 %v1022, 127
        %v1024 = vand.u32 2147483647, %v346
        %v1025 = vand.u32 %v1024, 8388607
        %v1026 = vor.u32 %v1025, 8388608
        %v1027 = vsub.s32 0, %v1026
        %v1028 = vadd.s32 %v1023, 1
        %vm1029 = vcmp.gt.s32.totalorder %v1028, 0
        %v1030 = vsel %vm1029, %v1028, 0
        %v1031 = vshrl.u32 %v1030, 5
        %v1032 = vand.u32 %v1030, 31
        %v1033 = vsub.s32 32, %v1032
        %v1034 = vshrl.u32 683565275, %v1033
        %v1035 = vshll.u32 683565275, %v1032
        %v1036 = vshrl.u32 2475754826, %v1033
        %v1037 = vor.u32 %v1035, %v1036
        %v1038 = vshll.u32 2475754826, %v1032
        %v1039 = vshrl.u32 2131351028, %v1033
        %v1040 = vor.u32 %v1038, %v1039
        %v1041 = vshll.u32 2131351028, %v1032
        %v1042 = vshrl.u32 2102212464, %v1033
        %v1043 = vor.u32 %v1041, %v1042
        %v1044 = vshll.u32 2102212464, %v1032
        %v1045 = vshrl.u32 920167782, %v1033
        %v1046 = vor.u32 %v1044, %v1045
        %v1047 = vshll.u32 920167782, %v1032
        %v1048 = vshrl.u32 1326507024, %v1033
        %v1049 = vor.u32 %v1047, %v1048
        %vm1050 = vcmp.lt.s32.totalorder %v1031, 1
        %vm1051 = vcmp.lt.s32.totalorder %v1031, 2
        %vm1052 = vcmp.lt.s32.totalorder %v1031, 3
        %vm1053 = vcmp.lt.s32.totalorder %v1031, 4
        %v1054 = vsel %vm1050, %v1034, %v1037
        %v1055 = vsel %vm1053, %v1043, 2102212464
        %v1056 = vsel %vm1052, %v1040, %v1055
        %v1057 = vsel %vm1051, %v1054, %v1056
        %v1058 = vsel %vm1050, %v1037, %v1040
        %v1059 = vsel %vm1053, %v1046, 920167782
        %v1060 = vsel %vm1052, %v1043, %v1059
        %v1061 = vsel %vm1051, %v1058, %v1060
        %v1062 = vsel %vm1050, %v1040, %v1043
        %v1063 = vsel %vm1053, %v1049, 1326507024
        %v1064 = vsel %vm1052, %v1046, %v1063
        %v1065 = vsel %vm1051, %v1062, %v1064
        %v1066 = vshll.u32 %v1026, 8
        %v1067 = vmul.u32.u64.compose %v1066, %v1065
        %v1068 = vextract.low.u32 %v1067
        %v1069 = vextract.high.u32 %v1067
        %v1070 = vmul.u32.u64.compose %v1066, %v1061
        %v1071 = vextract.low.u32 %v1070
        %v1072 = vextract.high.u32 %v1070
        %v1073 = vmul.u32 %v1066, %v1057
        %v1074 = vadd.s32 %v1069, %v1071
        %vm1075 = vc.u32 %v1069, %v1071
        %v1076 = vadd.s32 %v1072, 1
        %v1077 = vsel %vm1075, %v1076, %v1072
        %v1078 = vadd.s32 %v1073, %v1077
        %v1079 = vadd.s32 %v1078, 536870912
        %v1080 = vshrl.u32 %v1079, 30
        %v1081 = vshll.u32 %v1080, 30
        %v1082 = vsub.s32 %v1078, %v1081
        %vm1083 = vcmp.lt.s32.totalorder %v1082, 0
        %v1084 = vsub.s32 0, %v1082
        %v1085 = vsel %vm1083, %v1084, %v1082
        %v1086 = vclz %v1085
        %v1087 = vsub.s32 %v1086, 2
        %vm1088 = vcmp.gt.s32.totalorder 0, %v1087
        %v1089 = vsel %vm1088, 0, %v1087
        %v1090 = vsub.s32 32, %v1089
        %v1091 = vshll.u32 %v1082, %v1089
        %v1092 = vshrl.u32 %v1074, %v1090
        %v1093 = vor.u32 %v1091, %v1092
        %v1094 = vsub.s32 4294967266, %v1089
        %v1095 = vadd.s32 %v1094, 127
        %v1096 = vshll.u32 %v1095, 23
        %v1097 = vor.u32 4788187, %v1096
        %v1098 = vand.u32 2147483647, %v1097
        %v1100 = vcvt.s32.f32 %v1093
        %v1101 = vmul.f32 %v1100, %v1098
        %v1102 = vxor.u32 %v1101, 2147483648
        %v1103 = vsel %vm1020, %v1102, %v1101
        %v1104 = vsub.s32 4, %v1080
        %v1105 = vsel %vm1020, %v1104, %v1080
        %v1106 = vsel %vm1019, %v346, %v1103
        %v1107 = vsel %vm1019, 0, %v1105
        %v1108 = vcosq.f32.pop %v1106
        %v1109 = vsinq.f32.pop %v1106
        %vm1110 = vweird.f32 %v346
        %v1111 = vadd.s32 %v1107, 3
        %v1112 = vand.u32 %v1111, 3
        %vm1113 = vcmp.lt.s32.totalorder %v1112, 2
        %vm1114 = vcmp.eq.s32.totalorder %v1112, 0
        %v1115 = vxor.u32 %v1109, 2147483648
        %v1116 = vsel %vm1114, %v1108, %v1115
        %vm1117 = vcmp.eq.s32.totalorder %v1112, 2
        %v1118 = vxor.u32 %v1108, 2147483648
        %v1119 = vsel %vm1117, %v1118, %v1109
        %v1120 = vsel %vm1113, %v1116, %v1119
        %v1121 = vsel %vm1110, nan, %v1120
        %v1122 = vand.u32 2147483647, %v351
        %vm1123 = vcmp.le.f32.partialorder %v1122, 0.7853982
        %vm1124 = vcmp.lt.s32.totalorder %v351, 0
        %v1125 = vand.u32 %v351, 2139095040
        %v1126 = vshrl.u32 %v1125, 23
        %v1127 = vsub.s32 %v1126, 127
        %v1128 = vand.u32 2147483647, %v351
        %v1129 = vand.u32 %v1128, 8388607
        %v1130 = vor.u32 %v1129, 8388608
        %v1131 = vsub.s32 0, %v1130
        %v1132 = vadd.s32 %v1127, 1
        %vm1133 = vcmp.gt.s32.totalorder %v1132, 0
        %v1134 = vsel %vm1133, %v1132, 0
        %v1135 = vshrl.u32 %v1134, 5
        %v1136 = vand.u32 %v1134, 31
        %v1137 = vsub.s32 32, %v1136
        %v1138 = vshrl.u32 683565275, %v1137
        %v1139 = vshll.u32 683565275, %v1136
        %v1140 = vshrl.u32 2475754826, %v1137
        %v1141 = vor.u32 %v1139, %v1140
        %v1142 = vshll.u32 2475754826, %v1136
        %v1143 = vshrl.u32 2131351028, %v1137
        %v1144 = vor.u32 %v1142, %v1143
        %v1145 = vshll.u32 2131351028, %v1136
        %v1146 = vshrl.u32 2102212464, %v1137
        %v1147 = vor.u32 %v1145, %v1146
        %v1148 = vshll.u32 2102212464, %v1136
        %v1149 = vshrl.u32 920167782, %v1137
        %v1150 = vor.u32 %v1148, %v1149
        %v1151 = vshll.u32 920167782, %v1136
        %v1152 = vshrl.u32 1326507024, %v1137
        %v1153 = vor.u32 %v1151, %v1152
        %vm1154 = vcmp.lt.s32.totalorder %v1135, 1
        %vm1155 = vcmp.lt.s32.totalorder %v1135, 2
        %vm1156 = vcmp.lt.s32.totalorder %v1135, 3
        %vm1157 = vcmp.lt.s32.totalorder %v1135, 4
        %v1158 = vsel %vm1154, %v1138, %v1141
        %v1159 = vsel %vm1157, %v1147, 2102212464
        %v1160 = vsel %vm1156, %v1144, %v1159
        %v1161 = vsel %vm1155, %v1158, %v1160
        %v1162 = vsel %vm1154, %v1141, %v1144
        %v1163 = vsel %vm1157, %v1150, 920167782
        %v1164 = vsel %vm1156, %v1147, %v1163
        %v1165 = vsel %vm1155, %v1162, %v1164
        %v1166 = vsel %vm1154, %v1144, %v1147
        %v1167 = vsel %vm1157, %v1153, 1326507024
        %v1168 = vsel %vm1156, %v1150, %v1167
        %v1169 = vsel %vm1155, %v1166, %v1168
        %v1170 = vshll.u32 %v1130, 8
        %v1171 = vmul.u32.u64.compose %v1170, %v1169
        %v1172 = vextract.low.u32 %v1171
        %v1173 = vextract.high.u32 %v1171
        %v1174 = vmul.u32.u64.compose %v1170, %v1165
        %v1175 = vextract.low.u32 %v1174
        %v1176 = vextract.high.u32 %v1174
        %v1177 = vmul.u32 %v1170, %v1161
        %v1178 = vadd.s32 %v1173, %v1175
        %vm1179 = vc.u32 %v1173, %v1175
        %v1180 = vadd.s32 %v1176, 1
        %v1181 = vsel %vm1179, %v1180, %v1176
        %v1182 = vadd.s32 %v1177, %v1181
        %v1183 = vadd.s32 %v1182, 536870912
        %v1184 = vshrl.u32 %v1183, 30
        %v1185 = vshll.u32 %v1184, 30
        %v1186 = vsub.s32 %v1182, %v1185
        %vm1187 = vcmp.lt.s32.totalorder %v1186, 0
        %v1188 = vsub.s32 0, %v1186
        %v1189 = vsel %vm1187, %v1188, %v1186
        %v1190 = vclz %v1189
        %v1191 = vsub.s32 %v1190, 2
        %vm1192 = vcmp.gt.s32.totalorder 0, %v1191
        %v1193 = vsel %vm1192, 0, %v1191
        %v1194 = vsub.s32 32, %v1193
        %v1195 = vshll.u32 %v1186, %v1193
        %v1196 = vshrl.u32 %v1178, %v1194
        %v1197 = vor.u32 %v1195, %v1196
        %v1198 = vsub.s32 4294967266, %v1193
        %v1199 = vadd.s32 %v1198, 127
        %v1200 = vshll.u32 %v1199, 23
        %v1201 = vor.u32 4788187, %v1200
        %v1202 = vand.u32 2147483647, %v1201
        %v1204 = vcvt.s32.f32 %v1197
        %v1205 = vmul.f32 %v1204, %v1202
        %v1206 = vxor.u32 %v1205, 2147483648
        %v1207 = vsel %vm1124, %v1206, %v1205
        %v1208 = vsub.s32 4, %v1184
        %v1209 = vsel %vm1124, %v1208, %v1184
        %v1210 = vsel %vm1123, %v351, %v1207
        %v1211 = vsel %vm1123, 0, %v1209
        %v1212 = vcosq.f32.pop %v1210
        %v1213 = vsinq.f32.pop %v1210
        %vm1214 = vweird.f32 %v351
        %v1215 = vadd.s32 %v1211, 3
        %v1216 = vand.u32 %v1215, 3
        %vm1217 = vcmp.lt.s32.totalorder %v1216, 2
        %vm1218 = vcmp.eq.s32.totalorder %v1216, 0
        %v1219 = vxor.u32 %v1213, 2147483648
        %v1220 = vsel %vm1218, %v1212, %v1219
        %vm1221 = vcmp.eq.s32.totalorder %v1216, 2
        %v1222 = vxor.u32 %v1212, 2147483648
        %v1223 = vsel %vm1221, %v1222, %v1213
        %v1224 = vsel %vm1217, %v1220, %v1223
        %v1225 = vsel %vm1214, nan, %v1224
        %v1226 = vand.u32 2147483647, %v356
        %vm1227 = vcmp.le.f32.partialorder %v1226, 0.7853982
        %vm1228 = vcmp.lt.s32.totalorder %v356, 0
        %v1229 = vand.u32 %v356, 2139095040
        %v1230 = vshrl.u32 %v1229, 23
        %v1231 = vsub.s32 %v1230, 127
        %v1232 = vand.u32 2147483647, %v356
        %v1233 = vand.u32 %v1232, 8388607
        %v1234 = vor.u32 %v1233, 8388608
        %v1235 = vsub.s32 0, %v1234
        %v1236 = vadd.s32 %v1231, 1
        %vm1237 = vcmp.gt.s32.totalorder %v1236, 0
        %v1238 = vsel %vm1237, %v1236, 0
        %v1239 = vshrl.u32 %v1238, 5
        %v1240 = vand.u32 %v1238, 31
        %v1241 = vsub.s32 32, %v1240
        %v1242 = vshrl.u32 683565275, %v1241
        %v1243 = vshll.u32 683565275, %v1240
        %v1244 = vshrl.u32 2475754826, %v1241
        %v1245 = vor.u32 %v1243, %v1244
        %v1246 = vshll.u32 2475754826, %v1240
        %v1247 = vshrl.u32 2131351028, %v1241
        %v1248 = vor.u32 %v1246, %v1247
        %v1249 = vshll.u32 2131351028, %v1240
        %v1250 = vshrl.u32 2102212464, %v1241
        %v1251 = vor.u32 %v1249, %v1250
        %v1252 = vshll.u32 2102212464, %v1240
        %v1253 = vshrl.u32 920167782, %v1241
        %v1254 = vor.u32 %v1252, %v1253
        %v1255 = vshll.u32 920167782, %v1240
        %v1256 = vshrl.u32 1326507024, %v1241
        %v1257 = vor.u32 %v1255, %v1256
        %vm1258 = vcmp.lt.s32.totalorder %v1239, 1
        %vm1259 = vcmp.lt.s32.totalorder %v1239, 2
        %vm1260 = vcmp.lt.s32.totalorder %v1239, 3
        %vm1261 = vcmp.lt.s32.totalorder %v1239, 4
        %v1262 = vsel %vm1258, %v1242, %v1245
        %v1263 = vsel %vm1261, %v1251, 2102212464
        %v1264 = vsel %vm1260, %v1248, %v1263
        %v1265 = vsel %vm1259, %v1262, %v1264
        %v1266 = vsel %vm1258, %v1245, %v1248
        %v1267 = vsel %vm1261, %v1254, 920167782
        %v1268 = vsel %vm1260, %v1251, %v1267
        %v1269 = vsel %vm1259, %v1266, %v1268
        %v1270 = vsel %vm1258, %v1248, %v1251
        %v1271 = vsel %vm1261, %v1257, 1326507024
        %v1272 = vsel %vm1260, %v1254, %v1271
        %v1273 = vsel %vm1259, %v1270, %v1272
        %v1274 = vshll.u32 %v1234, 8
        %v1275 = vmul.u32.u64.compose %v1274, %v1273
        %v1276 = vextract.low.u32 %v1275
        %v1277 = vextract.high.u32 %v1275
        %v1278 = vmul.u32.u64.compose %v1274, %v1269
        %v1279 = vextract.low.u32 %v1278
        %v1280 = vextract.high.u32 %v1278
        %v1281 = vmul.u32 %v1274, %v1265
        %v1282 = vadd.s32 %v1277, %v1279
        %vm1283 = vc.u32 %v1277, %v1279
        %v1284 = vadd.s32 %v1280, 1
        %v1285 = vsel %vm1283, %v1284, %v1280
        %v1286 = vadd.s32 %v1281, %v1285
        %v1287 = vadd.s32 %v1286, 536870912
        %v1288 = vshrl.u32 %v1287, 30
        %v1289 = vshll.u32 %v1288, 30
        %v1290 = vsub.s32 %v1286, %v1289
        %vm1291 = vcmp.lt.s32.totalorder %v1290, 0
        %v1292 = vsub.s32 0, %v1290
        %v1293 = vsel %vm1291, %v1292, %v1290
        %v1294 = vclz %v1293
        %v1295 = vsub.s32 %v1294, 2
        %vm1296 = vcmp.gt.s32.totalorder 0, %v1295
        %v1297 = vsel %vm1296, 0, %v1295
        %v1298 = vsub.s32 32, %v1297
        %v1299 = vshll.u32 %v1290, %v1297
        %v1300 = vshrl.u32 %v1282, %v1298
        %v1301 = vor.u32 %v1299, %v1300
        %v1302 = vsub.s32 4294967266, %v1297
        %v1303 = vadd.s32 %v1302, 127
        %v1304 = vshll.u32 %v1303, 23
        %v1305 = vor.u32 4788187, %v1304
        %v1306 = vand.u32 2147483647, %v1305
        %v1308 = vcvt.s32.f32 %v1301
        %v1309 = vmul.f32 %v1308, %v1306
        %v1310 = vxor.u32 %v1309, 2147483648
        %v1311 = vsel %vm1228, %v1310, %v1309
        %v1312 = vsub.s32 4, %v1288
        %v1313 = vsel %vm1228, %v1312, %v1288
        %v1314 = vsel %vm1227, %v356, %v1311
        %v1315 = vsel %vm1227, 0, %v1313
        %v1316 = vcosq.f32.pop %v1314
        %v1317 = vsinq.f32.pop %v1314
        %vm1318 = vweird.f32 %v356
        %v1319 = vadd.s32 %v1315, 3
        %v1320 = vand.u32 %v1319, 3
        %vm1321 = vcmp.lt.s32.totalorder %v1320, 2
        %vm1322 = vcmp.eq.s32.totalorder %v1320, 0
        %v1323 = vxor.u32 %v1317, 2147483648
        %v1324 = vsel %vm1322, %v1316, %v1323
        %vm1325 = vcmp.eq.s32.totalorder %v1320, 2
        %v1326 = vxor.u32 %v1316, 2147483648
        %v1327 = vsel %vm1325, %v1326, %v1317
        %v1328 = vsel %vm1321, %v1324, %v1327
        %v1329 = vsel %vm1318, nan, %v1328
        %v1330 = vand.u32 2147483647, %v361
        %vm1331 = vcmp.le.f32.partialorder %v1330, 0.7853982
        %vm1332 = vcmp.lt.s32.totalorder %v361, 0
        %v1333 = vand.u32 %v361, 2139095040
        %v1334 = vshrl.u32 %v1333, 23
        %v1335 = vsub.s32 %v1334, 127
        %v1336 = vand.u32 2147483647, %v361
        %v1337 = vand.u32 %v1336, 8388607
        %v1338 = vor.u32 %v1337, 8388608
        %v1339 = vsub.s32 0, %v1338
        %v1340 = vadd.s32 %v1335, 1
        %vm1341 = vcmp.gt.s32.totalorder %v1340, 0
        %v1342 = vsel %vm1341, %v1340, 0
        %v1343 = vshrl.u32 %v1342, 5
        %v1344 = vand.u32 %v1342, 31
        %v1345 = vsub.s32 32, %v1344
        %v1346 = vshrl.u32 683565275, %v1345
        %v1347 = vshll.u32 683565275, %v1344
        %v1348 = vshrl.u32 2475754826, %v1345
        %v1349 = vor.u32 %v1347, %v1348
        %v1350 = vshll.u32 2475754826, %v1344
        %v1351 = vshrl.u32 2131351028, %v1345
        %v1352 = vor.u32 %v1350, %v1351
        %v1353 = vshll.u32 2131351028, %v1344
        %v1354 = vshrl.u32 2102212464, %v1345
        %v1355 = vor.u32 %v1353, %v1354
        %v1356 = vshll.u32 2102212464, %v1344
        %v1357 = vshrl.u32 920167782, %v1345
        %v1358 = vor.u32 %v1356, %v1357
        %v1359 = vshll.u32 920167782, %v1344
        %v1360 = vshrl.u32 1326507024, %v1345
        %v1361 = vor.u32 %v1359, %v1360
        %vm1362 = vcmp.lt.s32.totalorder %v1343, 1
        %vm1363 = vcmp.lt.s32.totalorder %v1343, 2
        %vm1364 = vcmp.lt.s32.totalorder %v1343, 3
        %vm1365 = vcmp.lt.s32.totalorder %v1343, 4
        %v1366 = vsel %vm1362, %v1346, %v1349
        %v1367 = vsel %vm1365, %v1355, 2102212464
        %v1368 = vsel %vm1364, %v1352, %v1367
        %v1369 = vsel %vm1363, %v1366, %v1368
        %v1370 = vsel %vm1362, %v1349, %v1352
        %v1371 = vsel %vm1365, %v1358, 920167782
        %v1372 = vsel %vm1364, %v1355, %v1371
        %v1373 = vsel %vm1363, %v1370, %v1372
        %v1374 = vsel %vm1362, %v1352, %v1355
        %v1375 = vsel %vm1365, %v1361, 1326507024
        %v1376 = vsel %vm1364, %v1358, %v1375
        %v1377 = vsel %vm1363, %v1374, %v1376
        %v1378 = vshll.u32 %v1338, 8
        %v1379 = vmul.u32.u64.compose %v1378, %v1377
        %v1380 = vextract.low.u32 %v1379
        %v1381 = vextract.high.u32 %v1379
        %v1382 = vmul.u32.u64.compose %v1378, %v1373
        %v1383 = vextract.low.u32 %v1382
        %v1384 = vextract.high.u32 %v1382
        %v1385 = vmul.u32 %v1378, %v1369
        %v1386 = vadd.s32 %v1381, %v1383
        %vm1387 = vc.u32 %v1381, %v1383
        %v1388 = vadd.s32 %v1384, 1
        %v1389 = vsel %vm1387, %v1388, %v1384
        %v1390 = vadd.s32 %v1385, %v1389
        %v1391 = vadd.s32 %v1390, 536870912
        %v1392 = vshrl.u32 %v1391, 30
        %v1393 = vshll.u32 %v1392, 30
        %v1394 = vsub.s32 %v1390, %v1393
        %vm1395 = vcmp.lt.s32.totalorder %v1394, 0
        %v1396 = vsub.s32 0, %v1394
        %v1397 = vsel %vm1395, %v1396, %v1394
        %v1398 = vclz %v1397
        %v1399 = vsub.s32 %v1398, 2
        %vm1400 = vcmp.gt.s32.totalorder 0, %v1399
        %v1401 = vsel %vm1400, 0, %v1399
        %v1402 = vsub.s32 32, %v1401
        %v1403 = vshll.u32 %v1394, %v1401
        %v1404 = vshrl.u32 %v1386, %v1402
        %v1405 = vor.u32 %v1403, %v1404
        %v1406 = vsub.s32 4294967266, %v1401
        %v1407 = vadd.s32 %v1406, 127
        %v1408 = vshll.u32 %v1407, 23
        %v1409 = vor.u32 4788187, %v1408
        %v1410 = vand.u32 2147483647, %v1409
        %v1412 = vcvt.s32.f32 %v1405
        %v1413 = vmul.f32 %v1412, %v1410
        %v1414 = vxor.u32 %v1413, 2147483648
        %v1415 = vsel %vm1332, %v1414, %v1413
        %v1416 = vsub.s32 4, %v1392
        %v1417 = vsel %vm1332, %v1416, %v1392
        %v1418 = vsel %vm1331, %v361, %v1415
        %v1419 = vsel %vm1331, 0, %v1417
        %v1420 = vcosq.f32.pop %v1418
        %v1421 = vsinq.f32.pop %v1418
        %vm1422 = vweird.f32 %v361
        %v1423 = vadd.s32 %v1419, 3
        %v1424 = vand.u32 %v1423, 3
        %vm1425 = vcmp.lt.s32.totalorder %v1424, 2
        %vm1426 = vcmp.eq.s32.totalorder %v1424, 0
        %v1427 = vxor.u32 %v1421, 2147483648
        %v1428 = vsel %vm1426, %v1420, %v1427
        %vm1429 = vcmp.eq.s32.totalorder %v1424, 2
        %v1430 = vxor.u32 %v1420, 2147483648
        %v1431 = vsel %vm1429, %v1430, %v1421
        %v1432 = vsel %vm1425, %v1428, %v1431
        %v1433 = vsel %vm1422, nan, %v1432
        %v1434 = vand.u32 2147483647, %v366
        %vm1435 = vcmp.le.f32.partialorder %v1434, 0.7853982
        %vm1436 = vcmp.lt.s32.totalorder %v366, 0
        %v1437 = vand.u32 %v366, 2139095040
        %v1438 = vshrl.u32 %v1437, 23
        %v1439 = vsub.s32 %v1438, 127
        %v1440 = vand.u32 2147483647, %v366
        %v1441 = vand.u32 %v1440, 8388607
        %v1442 = vor.u32 %v1441, 8388608
        %v1443 = vsub.s32 0, %v1442
        %v1444 = vadd.s32 %v1439, 1
        %vm1445 = vcmp.gt.s32.totalorder %v1444, 0
        %v1446 = vsel %vm1445, %v1444, 0
        %v1447 = vshrl.u32 %v1446, 5
        %v1448 = vand.u32 %v1446, 31
        %v1449 = vsub.s32 32, %v1448
        %v1450 = vshrl.u32 683565275, %v1449
        %v1451 = vshll.u32 683565275, %v1448
        %v1452 = vshrl.u32 2475754826, %v1449
        %v1453 = vor.u32 %v1451, %v1452
        %v1454 = vshll.u32 2475754826, %v1448
        %v1455 = vshrl.u32 2131351028, %v1449
        %v1456 = vor.u32 %v1454, %v1455
        %v1457 = vshll.u32 2131351028, %v1448
        %v1458 = vshrl.u32 2102212464, %v1449
        %v1459 = vor.u32 %v1457, %v1458
        %v1460 = vshll.u32 2102212464, %v1448
        %v1461 = vshrl.u32 920167782, %v1449
        %v1462 = vor.u32 %v1460, %v1461
        %v1463 = vshll.u32 920167782, %v1448
        %v1464 = vshrl.u32 1326507024, %v1449
        %v1465 = vor.u32 %v1463, %v1464
        %vm1466 = vcmp.lt.s32.totalorder %v1447, 1
        %vm1467 = vcmp.lt.s32.totalorder %v1447, 2
        %vm1468 = vcmp.lt.s32.totalorder %v1447, 3
        %vm1469 = vcmp.lt.s32.totalorder %v1447, 4
        %v1470 = vsel %vm1466, %v1450, %v1453
        %v1471 = vsel %vm1469, %v1459, 2102212464
        %v1472 = vsel %vm1468, %v1456, %v1471
        %v1473 = vsel %vm1467, %v1470, %v1472
        %v1474 = vsel %vm1466, %v1453, %v1456
        %v1475 = vsel %vm1469, %v1462, 920167782
        %v1476 = vsel %vm1468, %v1459, %v1475
        %v1477 = vsel %vm1467, %v1474, %v1476
        %v1478 = vsel %vm1466, %v1456, %v1459
        %v1479 = vsel %vm1469, %v1465, 1326507024
        %v1480 = vsel %vm1468, %v1462, %v1479
        %v1481 = vsel %vm1467, %v1478, %v1480
        %v1482 = vshll.u32 %v1442, 8
        %v1483 = vmul.u32.u64.compose %v1482, %v1481
        %v1484 = vextract.low.u32 %v1483
        %v1485 = vextract.high.u32 %v1483
        %v1486 = vmul.u32.u64.compose %v1482, %v1477
        %v1487 = vextract.low.u32 %v1486
        %v1488 = vextract.high.u32 %v1486
        %v1489 = vmul.u32 %v1482, %v1473
        %v1490 = vadd.s32 %v1485, %v1487
        %vm1491 = vc.u32 %v1485, %v1487
        %v1492 = vadd.s32 %v1488, 1
        %v1493 = vsel %vm1491, %v1492, %v1488
        %v1494 = vadd.s32 %v1489, %v1493
        %v1495 = vadd.s32 %v1494, 536870912
        %v1496 = vshrl.u32 %v1495, 30
        %v1497 = vshll.u32 %v1496, 30
        %v1498 = vsub.s32 %v1494, %v1497
        %vm1499 = vcmp.lt.s32.totalorder %v1498, 0
        %v1500 = vsub.s32 0, %v1498
        %v1501 = vsel %vm1499, %v1500, %v1498
        %v1502 = vclz %v1501
        %v1503 = vsub.s32 %v1502, 2
        %vm1504 = vcmp.gt.s32.totalorder 0, %v1503
        %v1505 = vsel %vm1504, 0, %v1503
        %v1506 = vsub.s32 32, %v1505
        %v1507 = vshll.u32 %v1498, %v1505
        %v1508 = vshrl.u32 %v1490, %v1506
        %v1509 = vor.u32 %v1507, %v1508
        %v1510 = vsub.s32 4294967266, %v1505
        %v1511 = vadd.s32 %v1510, 127
        %v1512 = vshll.u32 %v1511, 23
        %v1513 = vor.u32 4788187, %v1512
        %v1514 = vand.u32 2147483647, %v1513
        %v1516 = vcvt.s32.f32 %v1509
        %v1517 = vmul.f32 %v1516, %v1514
        %v1518 = vxor.u32 %v1517, 2147483648
        %v1519 = vsel %vm1436, %v1518, %v1517
        %v1520 = vsub.s32 4, %v1496
        %v1521 = vsel %vm1436, %v1520, %v1496
        %v1522 = vsel %vm1435, %v366, %v1519
        %v1523 = vsel %vm1435, 0, %v1521
        %v1524 = vcosq.f32.pop %v1522
        %v1525 = vsinq.f32.pop %v1522
        %vm1526 = vweird.f32 %v366
        %v1527 = vadd.s32 %v1523, 3
        %v1528 = vand.u32 %v1527, 3
        %vm1529 = vcmp.lt.s32.totalorder %v1528, 2
        %vm1530 = vcmp.eq.s32.totalorder %v1528, 0
        %v1531 = vxor.u32 %v1525, 2147483648
        %v1532 = vsel %vm1530, %v1524, %v1531
        %vm1533 = vcmp.eq.s32.totalorder %v1528, 2
        %v1534 = vxor.u32 %v1524, 2147483648
        %v1535 = vsel %vm1533, %v1534, %v1525
        %v1536 = vsel %vm1529, %v1532, %v1535
        %v1537 = vsel %vm1526, nan, %v1536
        %v1538 = vand.u32 2147483647, %v371
        %vm1539 = vcmp.le.f32.partialorder %v1538, 0.7853982
        %vm1540 = vcmp.lt.s32.totalorder %v371, 0
        %v1541 = vand.u32 %v371, 2139095040
        %v1542 = vshrl.u32 %v1541, 23
        %v1543 = vsub.s32 %v1542, 127
        %v1544 = vand.u32 2147483647, %v371
        %v1545 = vand.u32 %v1544, 8388607
        %v1546 = vor.u32 %v1545, 8388608
        %v1547 = vsub.s32 0, %v1546
        %v1548 = vadd.s32 %v1543, 1
        %vm1549 = vcmp.gt.s32.totalorder %v1548, 0
        %v1550 = vsel %vm1549, %v1548, 0
        %v1551 = vshrl.u32 %v1550, 5
        %v1552 = vand.u32 %v1550, 31
        %v1553 = vsub.s32 32, %v1552
        %v1554 = vshrl.u32 683565275, %v1553
        %v1555 = vshll.u32 683565275, %v1552
        %v1556 = vshrl.u32 2475754826, %v1553
        %v1557 = vor.u32 %v1555, %v1556
        %v1558 = vshll.u32 2475754826, %v1552
        %v1559 = vshrl.u32 2131351028, %v1553
        %v1560 = vor.u32 %v1558, %v1559
        %v1561 = vshll.u32 2131351028, %v1552
        %v1562 = vshrl.u32 2102212464, %v1553
        %v1563 = vor.u32 %v1561, %v1562
        %v1564 = vshll.u32 2102212464, %v1552
        %v1565 = vshrl.u32 920167782, %v1553
        %v1566 = vor.u32 %v1564, %v1565
        %v1567 = vshll.u32 920167782, %v1552
        %v1568 = vshrl.u32 1326507024, %v1553
        %v1569 = vor.u32 %v1567, %v1568
        %vm1570 = vcmp.lt.s32.totalorder %v1551, 1
        %vm1571 = vcmp.lt.s32.totalorder %v1551, 2
        %vm1572 = vcmp.lt.s32.totalorder %v1551, 3
        %vm1573 = vcmp.lt.s32.totalorder %v1551, 4
        %v1574 = vsel %vm1570, %v1554, %v1557
        %v1575 = vsel %vm1573, %v1563, 2102212464
        %v1576 = vsel %vm1572, %v1560, %v1575
        %v1577 = vsel %vm1571, %v1574, %v1576
        %v1578 = vsel %vm1570, %v1557, %v1560
        %v1579 = vsel %vm1573, %v1566, 920167782
        %v1580 = vsel %vm1572, %v1563, %v1579
        %v1581 = vsel %vm1571, %v1578, %v1580
        %v1582 = vsel %vm1570, %v1560, %v1563
        %v1583 = vsel %vm1573, %v1569, 1326507024
        %v1584 = vsel %vm1572, %v1566, %v1583
        %v1585 = vsel %vm1571, %v1582, %v1584
        %v1586 = vshll.u32 %v1546, 8
        %v1587 = vmul.u32.u64.compose %v1586, %v1585
        %v1588 = vextract.low.u32 %v1587
        %v1589 = vextract.high.u32 %v1587
        %v1590 = vmul.u32.u64.compose %v1586, %v1581
        %v1591 = vextract.low.u32 %v1590
        %v1592 = vextract.high.u32 %v1590
        %v1593 = vmul.u32 %v1586, %v1577
        %v1594 = vadd.s32 %v1589, %v1591
        %vm1595 = vc.u32 %v1589, %v1591
        %v1596 = vadd.s32 %v1592, 1
        %v1597 = vsel %vm1595, %v1596, %v1592
        %v1598 = vadd.s32 %v1593, %v1597
        %v1599 = vadd.s32 %v1598, 536870912
        %v1600 = vshrl.u32 %v1599, 30
        %v1601 = vshll.u32 %v1600, 30
        %v1602 = vsub.s32 %v1598, %v1601
        %vm1603 = vcmp.lt.s32.totalorder %v1602, 0
        %v1604 = vsub.s32 0, %v1602
        %v1605 = vsel %vm1603, %v1604, %v1602
        %v1606 = vclz %v1605
        %v1607 = vsub.s32 %v1606, 2
        %vm1608 = vcmp.gt.s32.totalorder 0, %v1607
        %v1609 = vsel %vm1608, 0, %v1607
        %v1610 = vsub.s32 32, %v1609
        %v1611 = vshll.u32 %v1602, %v1609
        %v1612 = vshrl.u32 %v1594, %v1610
        %v1613 = vor.u32 %v1611, %v1612
        %v1614 = vsub.s32 4294967266, %v1609
        %v1615 = vadd.s32 %v1614, 127
        %v1616 = vshll.u32 %v1615, 23
        %v1617 = vor.u32 4788187, %v1616
        %v1618 = vand.u32 2147483647, %v1617
        %v1620 = vcvt.s32.f32 %v1613
        %v1621 = vmul.f32 %v1620, %v1618
        %v1622 = vxor.u32 %v1621, 2147483648
        %v1623 = vsel %vm1540, %v1622, %v1621
        %v1624 = vsub.s32 4, %v1600
        %v1625 = vsel %vm1540, %v1624, %v1600
        %v1626 = vsel %vm1539, %v371, %v1623
        %v1627 = vsel %vm1539, 0, %v1625
        %v1628 = vcosq.f32.pop %v1626
        %v1629 = vsinq.f32.pop %v1626
        %vm1630 = vweird.f32 %v371
        %v1631 = vadd.s32 %v1627, 3
        %v1632 = vand.u32 %v1631, 3
        %vm1633 = vcmp.lt.s32.totalorder %v1632, 2
        %vm1634 = vcmp.eq.s32.totalorder %v1632, 0
        %v1635 = vxor.u32 %v1629, 2147483648
        %v1636 = vsel %vm1634, %v1628, %v1635
        %vm1637 = vcmp.eq.s32.totalorder %v1632, 2
        %v1638 = vxor.u32 %v1628, 2147483648
        %v1639 = vsel %vm1637, %v1638, %v1629
        %v1640 = vsel %vm1633, %v1636, %v1639
        %v1641 = vsel %vm1630, nan, %v1640
        %v1642 = vand.u32 2147483647, %v376
        %vm1643 = vcmp.le.f32.partialorder %v1642, 0.7853982
        %vm1644 = vcmp.lt.s32.totalorder %v376, 0
        %v1645 = vand.u32 %v376, 2139095040
        %v1646 = vshrl.u32 %v1645, 23
        %v1647 = vsub.s32 %v1646, 127
        %v1648 = vand.u32 2147483647, %v376
        %v1649 = vand.u32 %v1648, 8388607
        %v1650 = vor.u32 %v1649, 8388608
        %v1651 = vsub.s32 0, %v1650
        %v1652 = vadd.s32 %v1647, 1
        %vm1653 = vcmp.gt.s32.totalorder %v1652, 0
        %v1654 = vsel %vm1653, %v1652, 0
        %v1655 = vshrl.u32 %v1654, 5
        %v1656 = vand.u32 %v1654, 31
        %v1657 = vsub.s32 32, %v1656
        %v1658 = vshrl.u32 683565275, %v1657
        %v1659 = vshll.u32 683565275, %v1656
        %v1660 = vshrl.u32 2475754826, %v1657
        %v1661 = vor.u32 %v1659, %v1660
        %v1662 = vshll.u32 2475754826, %v1656
        %v1663 = vshrl.u32 2131351028, %v1657
        %v1664 = vor.u32 %v1662, %v1663
        %v1665 = vshll.u32 2131351028, %v1656
        %v1666 = vshrl.u32 2102212464, %v1657
        %v1667 = vor.u32 %v1665, %v1666
        %v1668 = vshll.u32 2102212464, %v1656
        %v1669 = vshrl.u32 920167782, %v1657
        %v1670 = vor.u32 %v1668, %v1669
        %v1671 = vshll.u32 920167782, %v1656
        %v1672 = vshrl.u32 1326507024, %v1657
        %v1673 = vor.u32 %v1671, %v1672
        %vm1674 = vcmp.lt.s32.totalorder %v1655, 1
        %vm1675 = vcmp.lt.s32.totalorder %v1655, 2
        %vm1676 = vcmp.lt.s32.totalorder %v1655, 3
        %vm1677 = vcmp.lt.s32.totalorder %v1655, 4
        %v1678 = vsel %vm1674, %v1658, %v1661
        %v1679 = vsel %vm1677, %v1667, 2102212464
        %v1680 = vsel %vm1676, %v1664, %v1679
        %v1681 = vsel %vm1675, %v1678, %v1680
        %v1682 = vsel %vm1674, %v1661, %v1664
        %v1683 = vsel %vm1677, %v1670, 920167782
        %v1684 = vsel %vm1676, %v1667, %v1683
        %v1685 = vsel %vm1675, %v1682, %v1684
        %v1686 = vsel %vm1674, %v1664, %v1667
        %v1687 = vsel %vm1677, %v1673, 1326507024
        %v1688 = vsel %vm1676, %v1670, %v1687
        %v1689 = vsel %vm1675, %v1686, %v1688
        %v1690 = vshll.u32 %v1650, 8
        %v1691 = vmul.u32.u64.compose %v1690, %v1689
        %v1692 = vextract.low.u32 %v1691
        %v1693 = vextract.high.u32 %v1691
        %v1694 = vmul.u32.u64.compose %v1690, %v1685
        %v1695 = vextract.low.u32 %v1694
        %v1696 = vextract.high.u32 %v1694
        %v1697 = vmul.u32 %v1690, %v1681
        %v1698 = vadd.s32 %v1693, %v1695
        %vm1699 = vc.u32 %v1693, %v1695
        %v1700 = vadd.s32 %v1696, 1
        %v1701 = vsel %vm1699, %v1700, %v1696
        %v1702 = vadd.s32 %v1697, %v1701
        %v1703 = vadd.s32 %v1702, 536870912
        %v1704 = vshrl.u32 %v1703, 30
        %v1705 = vshll.u32 %v1704, 30
        %v1706 = vsub.s32 %v1702, %v1705
        %vm1707 = vcmp.lt.s32.totalorder %v1706, 0
        %v1708 = vsub.s32 0, %v1706
        %v1709 = vsel %vm1707, %v1708, %v1706
        %v1710 = vclz %v1709
        %v1711 = vsub.s32 %v1710, 2
        %vm1712 = vcmp.gt.s32.totalorder 0, %v1711
        %v1713 = vsel %vm1712, 0, %v1711
        %v1714 = vsub.s32 32, %v1713
        %v1715 = vshll.u32 %v1706, %v1713
        %v1716 = vshrl.u32 %v1698, %v1714
        %v1717 = vor.u32 %v1715, %v1716
        %v1718 = vsub.s32 4294967266, %v1713
        %v1719 = vadd.s32 %v1718, 127
        %v1720 = vshll.u32 %v1719, 23
        %v1721 = vor.u32 4788187, %v1720
        %v1722 = vand.u32 2147483647, %v1721
        %v1724 = vcvt.s32.f32 %v1717
        %v1725 = vmul.f32 %v1724, %v1722
        %v1726 = vxor.u32 %v1725, 2147483648
        %v1727 = vsel %vm1644, %v1726, %v1725
        %v1728 = vsub.s32 4, %v1704
        %v1729 = vsel %vm1644, %v1728, %v1704
        %v1730 = vsel %vm1643, %v376, %v1727
        %v1731 = vsel %vm1643, 0, %v1729
        %v1732 = vcosq.f32.pop %v1730
        %v1733 = vsinq.f32.pop %v1730
        %vm1734 = vweird.f32 %v376
        %v1735 = vadd.s32 %v1731, 3
        %v1736 = vand.u32 %v1735, 3
        %vm1737 = vcmp.lt.s32.totalorder %v1736, 2
        %vm1738 = vcmp.eq.s32.totalorder %v1736, 0
        %v1739 = vxor.u32 %v1733, 2147483648
        %v1740 = vsel %vm1738, %v1732, %v1739
        %vm1741 = vcmp.eq.s32.totalorder %v1736, 2
        %v1742 = vxor.u32 %v1732, 2147483648
        %v1743 = vsel %vm1741, %v1742, %v1733
        %v1744 = vsel %vm1737, %v1740, %v1743
        %v1745 = vsel %vm1734, nan, %v1744
        %v1746 = vand.u32 2147483647, %v381
        %vm1747 = vcmp.le.f32.partialorder %v1746, 0.7853982
        %vm1748 = vcmp.lt.s32.totalorder %v381, 0
        %v1749 = vand.u32 %v381, 2139095040
        %v1750 = vshrl.u32 %v1749, 23
        %v1751 = vsub.s32 %v1750, 127
        %v1752 = vand.u32 2147483647, %v381
        %v1753 = vand.u32 %v1752, 8388607
        %v1754 = vor.u32 %v1753, 8388608
        %v1755 = vsub.s32 0, %v1754
        %v1756 = vadd.s32 %v1751, 1
        %vm1757 = vcmp.gt.s32.totalorder %v1756, 0
        %v1758 = vsel %vm1757, %v1756, 0
        %v1759 = vshrl.u32 %v1758, 5
        %v1760 = vand.u32 %v1758, 31
        %v1761 = vsub.s32 32, %v1760
        %v1762 = vshrl.u32 683565275, %v1761
        %v1763 = vshll.u32 683565275, %v1760
        %v1764 = vshrl.u32 2475754826, %v1761
        %v1765 = vor.u32 %v1763, %v1764
        %v1766 = vshll.u32 2475754826, %v1760
        %v1767 = vshrl.u32 2131351028, %v1761
        %v1768 = vor.u32 %v1766, %v1767
        %v1769 = vshll.u32 2131351028, %v1760
        %v1770 = vshrl.u32 2102212464, %v1761
        %v1771 = vor.u32 %v1769, %v1770
        %v1772 = vshll.u32 2102212464, %v1760
        %v1773 = vshrl.u32 920167782, %v1761
        %v1774 = vor.u32 %v1772, %v1773
        %v1775 = vshll.u32 920167782, %v1760
        %v1776 = vshrl.u32 1326507024, %v1761
        %v1777 = vor.u32 %v1775, %v1776
        %vm1778 = vcmp.lt.s32.totalorder %v1759, 1
        %vm1779 = vcmp.lt.s32.totalorder %v1759, 2
        %vm1780 = vcmp.lt.s32.totalorder %v1759, 3
        %vm1781 = vcmp.lt.s32.totalorder %v1759, 4
        %v1782 = vsel %vm1778, %v1762, %v1765
        %v1783 = vsel %vm1781, %v1771, 2102212464
        %v1784 = vsel %vm1780, %v1768, %v1783
        %v1785 = vsel %vm1779, %v1782, %v1784
        %v1786 = vsel %vm1778, %v1765, %v1768
        %v1787 = vsel %vm1781, %v1774, 920167782
        %v1788 = vsel %vm1780, %v1771, %v1787
        %v1789 = vsel %vm1779, %v1786, %v1788
        %v1790 = vsel %vm1778, %v1768, %v1771
        %v1791 = vsel %vm1781, %v1777, 1326507024
        %v1792 = vsel %vm1780, %v1774, %v1791
        %v1793 = vsel %vm1779, %v1790, %v1792
        %v1794 = vshll.u32 %v1754, 8
        %v1795 = vmul.u32.u64.compose %v1794, %v1793
        %v1796 = vextract.low.u32 %v1795
        %v1797 = vextract.high.u32 %v1795
        %v1798 = vmul.u32.u64.compose %v1794, %v1789
        %v1799 = vextract.low.u32 %v1798
        %v1800 = vextract.high.u32 %v1798
        %v1801 = vmul.u32 %v1794, %v1785
        %v1802 = vadd.s32 %v1797, %v1799
        %vm1803 = vc.u32 %v1797, %v1799
        %v1804 = vadd.s32 %v1800, 1
        %v1805 = vsel %vm1803, %v1804, %v1800
        %v1806 = vadd.s32 %v1801, %v1805
        %v1807 = vadd.s32 %v1806, 536870912
        %v1808 = vshrl.u32 %v1807, 30
        %v1809 = vshll.u32 %v1808, 30
        %v1810 = vsub.s32 %v1806, %v1809
        %vm1811 = vcmp.lt.s32.totalorder %v1810, 0
        %v1812 = vsub.s32 0, %v1810
        %v1813 = vsel %vm1811, %v1812, %v1810
        %v1814 = vclz %v1813
        %v1815 = vsub.s32 %v1814, 2
        %vm1816 = vcmp.gt.s32.totalorder 0, %v1815
        %v1817 = vsel %vm1816, 0, %v1815
        %v1818 = vsub.s32 32, %v1817
        %v1819 = vshll.u32 %v1810, %v1817
        %v1820 = vshrl.u32 %v1802, %v1818
        %v1821 = vor.u32 %v1819, %v1820
        %v1822 = vsub.s32 4294967266, %v1817
        %v1823 = vadd.s32 %v1822, 127
        %v1824 = vshll.u32 %v1823, 23
        %v1825 = vor.u32 4788187, %v1824
        %v1826 = vand.u32 2147483647, %v1825
        %v1828 = vcvt.s32.f32 %v1821
        %v1829 = vmul.f32 %v1828, %v1826
        %v1830 = vxor.u32 %v1829, 2147483648
        %v1831 = vsel %vm1748, %v1830, %v1829
        %v1832 = vsub.s32 4, %v1808
        %v1833 = vsel %vm1748, %v1832, %v1808
        %v1834 = vsel %vm1747, %v381, %v1831
        %v1835 = vsel %vm1747, 0, %v1833
        %v1836 = vcosq.f32.pop %v1834
        %v1837 = vsinq.f32.pop %v1834
        %vm1838 = vweird.f32 %v381
        %v1839 = vadd.s32 %v1835, 3
        %v1840 = vand.u32 %v1839, 3
        %vm1841 = vcmp.lt.s32.totalorder %v1840, 2
        %vm1842 = vcmp.eq.s32.totalorder %v1840, 0
        %v1843 = vxor.u32 %v1837, 2147483648
        %v1844 = vsel %vm1842, %v1836, %v1843
        %vm1845 = vcmp.eq.s32.totalorder %v1840, 2
        %v1846 = vxor.u32 %v1836, 2147483648
        %v1847 = vsel %vm1845, %v1846, %v1837
        %v1848 = vsel %vm1841, %v1844, %v1847
        %v1849 = vsel %vm1838, nan, %v1848
        %v1850 = vand.u32 2147483647, %v386
        %vm1851 = vcmp.le.f32.partialorder %v1850, 0.7853982
        %vm1852 = vcmp.lt.s32.totalorder %v386, 0
        %v1853 = vand.u32 %v386, 2139095040
        %v1854 = vshrl.u32 %v1853, 23
        %v1855 = vsub.s32 %v1854, 127
        %v1856 = vand.u32 2147483647, %v386
        %v1857 = vand.u32 %v1856, 8388607
        %v1858 = vor.u32 %v1857, 8388608
        %v1859 = vsub.s32 0, %v1858
        %v1860 = vadd.s32 %v1855, 1
        %vm1861 = vcmp.gt.s32.totalorder %v1860, 0
        %v1862 = vsel %vm1861, %v1860, 0
        %v1863 = vshrl.u32 %v1862, 5
        %v1864 = vand.u32 %v1862, 31
        %v1865 = vsub.s32 32, %v1864
        %v1866 = vshrl.u32 683565275, %v1865
        %v1867 = vshll.u32 683565275, %v1864
        %v1868 = vshrl.u32 2475754826, %v1865
        %v1869 = vor.u32 %v1867, %v1868
        %v1870 = vshll.u32 2475754826, %v1864
        %v1871 = vshrl.u32 2131351028, %v1865
        %v1872 = vor.u32 %v1870, %v1871
        %v1873 = vshll.u32 2131351028, %v1864
        %v1874 = vshrl.u32 2102212464, %v1865
        %v1875 = vor.u32 %v1873, %v1874
        %v1876 = vshll.u32 2102212464, %v1864
        %v1877 = vshrl.u32 920167782, %v1865
        %v1878 = vor.u32 %v1876, %v1877
        %v1879 = vshll.u32 920167782, %v1864
        %v1880 = vshrl.u32 1326507024, %v1865
        %v1881 = vor.u32 %v1879, %v1880
        %vm1882 = vcmp.lt.s32.totalorder %v1863, 1
        %vm1883 = vcmp.lt.s32.totalorder %v1863, 2
        %vm1884 = vcmp.lt.s32.totalorder %v1863, 3
        %vm1885 = vcmp.lt.s32.totalorder %v1863, 4
        %v1886 = vsel %vm1882, %v1866, %v1869
        %v1887 = vsel %vm1885, %v1875, 2102212464
        %v1888 = vsel %vm1884, %v1872, %v1887
        %v1889 = vsel %vm1883, %v1886, %v1888
        %v1890 = vsel %vm1882, %v1869, %v1872
        %v1891 = vsel %vm1885, %v1878, 920167782
        %v1892 = vsel %vm1884, %v1875, %v1891
        %v1893 = vsel %vm1883, %v1890, %v1892
        %v1894 = vsel %vm1882, %v1872, %v1875
        %v1895 = vsel %vm1885, %v1881, 1326507024
        %v1896 = vsel %vm1884, %v1878, %v1895
        %v1897 = vsel %vm1883, %v1894, %v1896
        %v1898 = vshll.u32 %v1858, 8
        %v1899 = vmul.u32.u64.compose %v1898, %v1897
        %v1900 = vextract.low.u32 %v1899
        %v1901 = vextract.high.u32 %v1899
        %v1902 = vmul.u32.u64.compose %v1898, %v1893
        %v1903 = vextract.low.u32 %v1902
        %v1904 = vextract.high.u32 %v1902
        %v1905 = vmul.u32 %v1898, %v1889
        %v1906 = vadd.s32 %v1901, %v1903
        %vm1907 = vc.u32 %v1901, %v1903
        %v1908 = vadd.s32 %v1904, 1
        %v1909 = vsel %vm1907, %v1908, %v1904
        %v1910 = vadd.s32 %v1905, %v1909
        %v1911 = vadd.s32 %v1910, 536870912
        %v1912 = vshrl.u32 %v1911, 30
        %v1913 = vshll.u32 %v1912, 30
        %v1914 = vsub.s32 %v1910, %v1913
        %vm1915 = vcmp.lt.s32.totalorder %v1914, 0
        %v1916 = vsub.s32 0, %v1914
        %v1917 = vsel %vm1915, %v1916, %v1914
        %v1918 = vclz %v1917
        %v1919 = vsub.s32 %v1918, 2
        %vm1920 = vcmp.gt.s32.totalorder 0, %v1919
        %v1921 = vsel %vm1920, 0, %v1919
        %v1922 = vsub.s32 32, %v1921
        %v1923 = vshll.u32 %v1914, %v1921
        %v1924 = vshrl.u32 %v1906, %v1922
        %v1925 = vor.u32 %v1923, %v1924
        %v1926 = vsub.s32 4294967266, %v1921
        %v1927 = vadd.s32 %v1926, 127
        %v1928 = vshll.u32 %v1927, 23
        %v1929 = vor.u32 4788187, %v1928
        %v1930 = vand.u32 2147483647, %v1929
        %v1932 = vcvt.s32.f32 %v1925
        %v1933 = vmul.f32 %v1932, %v1930
        %v1934 = vxor.u32 %v1933, 2147483648
        %v1935 = vsel %vm1852, %v1934, %v1933
        %v1936 = vsub.s32 4, %v1912
        %v1937 = vsel %vm1852, %v1936, %v1912
        %v1938 = vsel %vm1851, %v386, %v1935
        %v1939 = vsel %vm1851, 0, %v1937
        %v1940 = vcosq.f32.pop %v1938
        %v1941 = vsinq.f32.pop %v1938
        %vm1942 = vweird.f32 %v386
        %v1943 = vadd.s32 %v1939, 3
        %v1944 = vand.u32 %v1943, 3
        %vm1945 = vcmp.lt.s32.totalorder %v1944, 2
        %vm1946 = vcmp.eq.s32.totalorder %v1944, 0
        %v1947 = vxor.u32 %v1941, 2147483648
        %v1948 = vsel %vm1946, %v1940, %v1947
        %vm1949 = vcmp.eq.s32.totalorder %v1944, 2
        %v1950 = vxor.u32 %v1940, 2147483648
        %v1951 = vsel %vm1949, %v1950, %v1941
        %v1952 = vsel %vm1945, %v1948, %v1951
        %v1953 = vsel %vm1942, nan, %v1952
        %v1954 = vand.u32 2147483647, %v391
        %vm1955 = vcmp.le.f32.partialorder %v1954, 0.7853982
        %vm1956 = vcmp.lt.s32.totalorder %v391, 0
        %v1957 = vand.u32 %v391, 2139095040
        %v1958 = vshrl.u32 %v1957, 23
        %v1959 = vsub.s32 %v1958, 127
        %v1960 = vand.u32 2147483647, %v391
        %v1961 = vand.u32 %v1960, 8388607
        %v1962 = vor.u32 %v1961, 8388608
        %v1963 = vsub.s32 0, %v1962
        %v1964 = vadd.s32 %v1959, 1
        %vm1965 = vcmp.gt.s32.totalorder %v1964, 0
        %v1966 = vsel %vm1965, %v1964, 0
        %v1967 = vshrl.u32 %v1966, 5
        %v1968 = vand.u32 %v1966, 31
        %v1969 = vsub.s32 32, %v1968
        %v1970 = vshrl.u32 683565275, %v1969
        %v1971 = vshll.u32 683565275, %v1968
        %v1972 = vshrl.u32 2475754826, %v1969
        %v1973 = vor.u32 %v1971, %v1972
        %v1974 = vshll.u32 2475754826, %v1968
        %v1975 = vshrl.u32 2131351028, %v1969
        %v1976 = vor.u32 %v1974, %v1975
        %v1977 = vshll.u32 2131351028, %v1968
        %v1978 = vshrl.u32 2102212464, %v1969
        %v1979 = vor.u32 %v1977, %v1978
        %v1980 = vshll.u32 2102212464, %v1968
        %v1981 = vshrl.u32 920167782, %v1969
        %v1982 = vor.u32 %v1980, %v1981
        %v1983 = vshll.u32 920167782, %v1968
        %v1984 = vshrl.u32 1326507024, %v1969
        %v1985 = vor.u32 %v1983, %v1984
        %vm1986 = vcmp.lt.s32.totalorder %v1967, 1
        %vm1987 = vcmp.lt.s32.totalorder %v1967, 2
        %vm1988 = vcmp.lt.s32.totalorder %v1967, 3
        %vm1989 = vcmp.lt.s32.totalorder %v1967, 4
        %v1990 = vsel %vm1986, %v1970, %v1973
        %v1991 = vsel %vm1989, %v1979, 2102212464
        %v1992 = vsel %vm1988, %v1976, %v1991
        %v1993 = vsel %vm1987, %v1990, %v1992
        %v1994 = vsel %vm1986, %v1973, %v1976
        %v1995 = vsel %vm1989, %v1982, 920167782
        %v1996 = vsel %vm1988, %v1979, %v1995
        %v1997 = vsel %vm1987, %v1994, %v1996
        %v1998 = vsel %vm1986, %v1976, %v1979
        %v1999 = vsel %vm1989, %v1985, 1326507024
        %v2000 = vsel %vm1988, %v1982, %v1999
        %v2001 = vsel %vm1987, %v1998, %v2000
        %v2002 = vshll.u32 %v1962, 8
        %v2003 = vmul.u32.u64.compose %v2002, %v2001
        %v2004 = vextract.low.u32 %v2003
        %v2005 = vextract.high.u32 %v2003
        %v2006 = vmul.u32.u64.compose %v2002, %v1997
        %v2007 = vextract.low.u32 %v2006
        %v2008 = vextract.high.u32 %v2006
        %v2009 = vmul.u32 %v2002, %v1993
        %v2010 = vadd.s32 %v2005, %v2007
        %vm2011 = vc.u32 %v2005, %v2007
        %v2012 = vadd.s32 %v2008, 1
        %v2013 = vsel %vm2011, %v2012, %v2008
        %v2014 = vadd.s32 %v2009, %v2013
        %v2015 = vadd.s32 %v2014, 536870912
        %v2016 = vshrl.u32 %v2015, 30
        %v2017 = vshll.u32 %v2016, 30
        %v2018 = vsub.s32 %v2014, %v2017
        %vm2019 = vcmp.lt.s32.totalorder %v2018, 0
        %v2020 = vsub.s32 0, %v2018
        %v2021 = vsel %vm2019, %v2020, %v2018
        %v2022 = vclz %v2021
        %v2023 = vsub.s32 %v2022, 2
        %vm2024 = vcmp.gt.s32.totalorder 0, %v2023
        %v2025 = vsel %vm2024, 0, %v2023
        %v2026 = vsub.s32 32, %v2025
        %v2027 = vshll.u32 %v2018, %v2025
        %v2028 = vshrl.u32 %v2010, %v2026
        %v2029 = vor.u32 %v2027, %v2028
        %v2030 = vsub.s32 4294967266, %v2025
        %v2031 = vadd.s32 %v2030, 127
        %v2032 = vshll.u32 %v2031, 23
        %v2033 = vor.u32 4788187, %v2032
        %v2034 = vand.u32 2147483647, %v2033
        %v2036 = vcvt.s32.f32 %v2029
        %v2037 = vmul.f32 %v2036, %v2034
        %v2038 = vxor.u32 %v2037, 2147483648
        %v2039 = vsel %vm1956, %v2038, %v2037
        %v2040 = vsub.s32 4, %v2016
        %v2041 = vsel %vm1956, %v2040, %v2016
        %v2042 = vsel %vm1955, %v391, %v2039
        %v2043 = vsel %vm1955, 0, %v2041
        %v2044 = vcosq.f32.pop %v2042
        %v2045 = vsinq.f32.pop %v2042
        %vm2046 = vweird.f32 %v391
        %v2047 = vadd.s32 %v2043, 3
        %v2048 = vand.u32 %v2047, 3
        %vm2049 = vcmp.lt.s32.totalorder %v2048, 2
        %vm2050 = vcmp.eq.s32.totalorder %v2048, 0
        %v2051 = vxor.u32 %v2045, 2147483648
        %v2052 = vsel %vm2050, %v2044, %v2051
        %vm2053 = vcmp.eq.s32.totalorder %v2048, 2
        %v2054 = vxor.u32 %v2044, 2147483648
        %v2055 = vsel %vm2053, %v2054, %v2045
        %v2056 = vsel %vm2049, %v2052, %v2055
        %v2057 = vsel %vm2046, nan, %v2056
        %2058 = vst [vmem:[%s164] sm:$0xff] %v497
        %2059 = vst [vmem:[%s164 + $0x8] sm:$0xff] %v601
        %2060 = vst [vmem:[%s164 + $0x10] sm:$0xff] %v705
        %2061 = vst [vmem:[%s164 + $0x18] sm:$0xff] %v809
        %2062 = vst [vmem:[%s164 + $0x20] sm:$0xff] %v913
        %2063 = vst [vmem:[%s164 + $0x28] sm:$0xff] %v1017
        %2064 = vst [vmem:[%s164 + $0x30] sm:$0xff] %v1121
        %2065 = vst [vmem:[%s164 + $0x38] sm:$0xff] %v1225
        %2066 = vst [vmem:[%s164 + $0x40] sm:$0xff] %v1329
        %2067 = vst [vmem:[%s164 + $0x48] sm:$0xff] %v1433
        %2068 = vst [vmem:[%s164 + $0x50] sm:$0xff] %v1537
        %2069 = vst [vmem:[%s164 + $0x58] sm:$0xff] %v1641
        %2070 = vst [vmem:[%s164 + $0x60] sm:$0xff] %v1745
        %2071 = vst [vmem:[%s164 + $0x68] sm:$0xff] %v1849
        %2072 = vst [vmem:[%s164 + $0x70] sm:$0xff] %v1953
        %2073 = vst [vmem:[%s164 + $0x78] sm:$0xff] %v2057
        %s2074 = sand.u32 %s93, 1
        %s2075 = scalar_lea.sflag [#allocation3], %s2074
        %s2076 = sand.u32 %s93, 1
        %s2077 = smul.addr %s2076, 128
        %s2078 = scalar_lea.vmem [#allocation2], %s2077
        // Predicated region
        $region33: #{gfft_apply.1} parent=31 // pred_check
          %p2079 = pneg %p103
        $region34: #{gfft_apply.1} parent=31 // pred_check_branch
          %2081 = sbr.rel (%p2079) target = $region36
        $region35: #{gfft_apply.1} parent=31 // pred_region
          %s2082 = smul.u32 16, %s17
          %s2084 = ssub.s32 2048, 2048
          %2085 = vsyncadd %s2075, %s2084
          %s2086 = smul.addr %s2082, 128
          %s2087 = scalar_lea.hbm %s3, %s2086
          %s2088 = sshll.u32 %s2078, 4
          %s2089 = int_to_ptr.vmem [resolvable:$true] %s2088
          %2094 = dma.vmem_to_hbm [thread:$0]  %s2089, 2048, %s2087, %s2075, 128, 128, 8
        $region36: #{gfft_apply.1} parent=31 // pred_fallthru
          _
      $region32: #{gfft_apply.1} parent=5 // pred_fallthru
        _
      %p2095 = scmp.le.s32.totalorder 2, %s12
      // Predicated region
      $region37: #{gfft_apply.1} parent=5 // pred_check
        %p2096 = pneg %p2095
      $region38: #{gfft_apply.1} parent=5 // pred_check_branch
        %2098 = sbr.rel (%p2096) target = $region40
      $region39: #{gfft_apply.1} parent=5 // pred_region
        %s2099 = ssub.s32 %s12, 2
        // Predicated region
        $region41: #{gfft_apply.1} parent=39 // pred_check
          %p2100 = pneg %p109
        $region42: #{gfft_apply.1} parent=39 // pred_check_branch
          %2102 = sbr.rel (%p2100) target = $region44
        $region43: #{gfft_apply.1} parent=39 // pred_region
          %s2103 = sand.u32 %s94, 1
          %s2104 = scalar_lea.sflag [#allocation3], %s2103
          %s2105 = sand.u32 %s94, 1
          %s2106 = smul.addr %s2105, 128
          %s2107 = scalar_lea.vmem [#allocation2], %s2106
          %2108 = dma.done %s2104, 2048
        $region44: #{gfft_apply.1} parent=39 // pred_fallthru
          _
      $region40: #{gfft_apply.1} parent=5 // pred_fallthru
        _
    $region6: #{gfft_apply.1} parent=1 // loop_footer
      %s16 = sadd.s32 1, %s12
    $region7: #{gfft_apply.1} parent=1 // loop_footer_branch
      %11 = sbr.rel target = $region3
    $region8: #{gfft_apply.1} parent=1 // loop_exit
      _
    %2109 = vsyncpa [#allocation3], 1
    %s2110 = scalar_lea.sflag [#allocation3], 1
    %2111 = vsyncpa %s2110, 1

</llo_original>
